<compile_context>
chip_gen: v5e
topology: v5e:2x2
jax: 0.10.0
libtpu: 0.0.40
codegen_flags: <defaults>
</compile_context>

<pallas_src>
import functools

import jax
import jax.numpy as jnp
from jax import lax
from jax.experimental import pallas as pl
from jax.experimental.pallas import tpu as pltpu


# ---------------------------------------------------------------------------
# Kernel: fused conv3x3(pad=1) + bias for one (batch, row-block) grid step.
# ---------------------------------------------------------------------------
def _ps_upsample_kernel(x_ref, xtop_ref, xbot_ref, w_ref, b_ref, o_ref,
                        xpad_ref, patch_ref, *, use_bf16_mxu=False):
    """
    x_ref:     (1, TH, W, Cin)     NHWC row block
    xtop_ref:  (1, 1,  W, Cin)     row above the block (clamped fetch at the boundary)
    xbot_ref:  (1, 1,  W, Cin)     row below the block (clamped fetch at the boundary)
    w_ref:     (K_pad, Ctot)       im2col weight, K zero-padded to a multiple of 128
    b_ref:     (1, Ctot)           bias
    o_ref:     (1, TH*W, Ctot)     dense conv output slab (pixel shuffle folded host-side)
    xpad_ref:  (TH+2, W+2, Cin)    VMEM scratch providing 'same' padding
    patch_ref: (TH, W, K_pad)      lane-aligned im2col scratch
    """
    TH, W, cin = x_ref.shape[1], x_ref.shape[2], x_ref.shape[3]
    k_pad, ctot = w_ref.shape
    k_raw = 9 * cin
    h = pl.program_id(1)
    n_hblk = pl.num_programs(1)
    f32 = jnp.float32

    # ---- in-kernel zero padding (1-px border) ------------------------------------
    # left / right zero columns (full height, covers the corners too)
    xpad_ref[:, 0:1, :] = jnp.zeros((TH + 2, 1, cin), f32)
    xpad_ref[:, W + 1:W + 2, :] = jnp.zeros((TH + 2, 1, cin), f32)
    # top / bottom halo rows: neighbour data, zeroed at the image boundary
    top = jnp.where(h > 0, xtop_ref[0].astype(f32), jnp.zeros((1, W, cin), f32))
    bot = jnp.where(h < n_hblk - 1, xbot_ref[0].astype(f32),
                    jnp.zeros((1, W, cin), f32))
    xpad_ref[0:1, 1:W + 1, :] = top
    xpad_ref[TH + 1:TH + 2, 1:W + 1, :] = bot
    # interior rows
    xpad_ref[1:TH + 1, 1:W + 1, :] = x_ref[0].astype(f32)

    # ---- lane-aligned im2col patch (TH, W, K_pad) --------------------------------
    if k_pad > k_raw:  # zero the K padding lanes (weights there are zero host-side)
        patch_ref[:, :, k_raw:] = jnp.zeros((TH, W, k_pad - k_raw), f32)
    for k in range(9):  # static offsets -> plain masked stores, no concat shuffles
        dy, dx = k // 3, k % 3
        patch_ref[:, :, k * cin:(k + 1) * cin] = xpad_ref[dy:dy + TH, dx:dx + W, :]

    # ---- single MXU contraction: (TH*W, K_pad) x (K_pad, Ctot) -------------------
    patch = patch_ref[...].reshape(TH * W, k_pad)  # collapse leading dims: free
    if use_bf16_mxu:
        patch = patch.astype(jnp.bfloat16)         # f32 accumulation below
    y = jnp.dot(patch, w_ref[...], preferred_element_type=jnp.float32)
    y = y + b_ref[...]                              # (1, Ctot) broadcast, f32

    # ---- one dense, lane-wide (TH*W, Ctot) store ---------------------------------
    o_ref[0, :, :] = y.astype(o_ref.dtype)


# ---------------------------------------------------------------------------
# Row-block size: largest divisor of H whose per-step working set fits a
# conservative VMEM budget (safe on v7x's 64 MiB; v5e/v6e have headroom).
# ---------------------------------------------------------------------------
def _pick_rows_per_block(H, W, cin, ctot, k_pad, budget_bytes=12 * 1024 * 1024):
    best = 1
    for th in range(1, H + 1):
        if H % th:
            continue
        io = 2 * (th * W * cin + 2 * W * cin + th * W * ctot) * 4   # double-buffered blocks
        scratch = ((th + 2) * (W + 2) * cin + th * W * k_pad) * 4   # xpad + patch
        resident = (k_pad * ctot + ctot) * 4                        # weights + bias
        if io + scratch + resident <= budget_bytes:
            best = th
    return best


# ---------------------------------------------------------------------------
# Wrapper (NCHW in / NCHW out, matching the PyTorch module)
# ---------------------------------------------------------------------------
def ps_upsample_forward(x_nchw, weight_oihw, bias, scale_factor, *,
                        rows_per_block=None, use_bf16_mxu=False):
    N, cin, H, W = x_nchw.shape
    ctot = weight_oihw.shape[0]
    r = int(scale_factor)
    out_feat = ctot // (r * r)

    k_raw = 9 * cin
    k_pad = max(128, ((k_raw + 127) // 128) * 128)

    if rows_per_block is None:
        rows_per_block = _pick_rows_per_block(H, W, cin, ctot, k_pad)
    TH = int(rows_per_block)
    assert H % TH == 0, "rows_per_block must divide H"
    n_hblk = H // TH

    # Conv weight OIHW -> im2col matrix (K = 9*Cin rows, zero-padded to k_pad).  Output
    # channels keep PyTorch's natural (c, a, b) order; the pixel shuffle is folded into
    # the single final transpose below, so the kernel's stores stay Ctot(=128)-lane dense.
    w_hwio = jnp.transpose(weight_oihw, (2, 3, 1, 0)).reshape(k_raw, ctot)
    w2d = jnp.zeros((k_pad, ctot), jnp.float32).at[:k_raw, :].set(
        w_hwio.astype(jnp.float32))
    if use_bf16_mxu:
        w2d = w2d.astype(jnp.bfloat16)
    b2d = bias.astype(jnp.float32).reshape(1, ctot)

    # Input NCHW -> NHWC (channels lane-major).  The input is the smallest HBM stream
    # (Ctot/Cin * r*r smaller than the output side); the output side pays no extra pass.
    x_nhwc = jnp.transpose(x_nchw, (0, 2, 3, 1)).astype(jnp.float32)

    kernel = functools.partial(_ps_upsample_kernel, use_bf16_mxu=use_bf16_mxu)

    def top_map(n, h):   # row above the block, clamped (zero-filled in-kernel at h == 0)
        return (n, jnp.maximum(h * TH - 1, 0), 0, 0)

    def bot_map(n, h):   # row below the block, clamped (zero-filled in-kernel at last h)
        return (n, jnp.minimum(h * TH + TH, H - 1), 0, 0)

    y3 = pl.pallas_call(
        kernel,
        out_shape=jax.ShapeDtypeStruct((N, H * W, ctot), jnp.float32),
        grid=(N, n_hblk),
        in_specs=[
            pl.BlockSpec((1, TH, W, cin), lambda n, h: (n, h, 0, 0)),  # row block
            pl.BlockSpec((1, 1, W, cin), top_map),                     # top halo row
            pl.BlockSpec((1, 1, W, cin), bot_map),                     # bottom halo row
            pl.BlockSpec((k_pad, ctot), lambda n, h: (0, 0)),          # resident weights
            pl.BlockSpec((1, ctot), lambda n, h: (0, 0)),              # resident bias
        ],
        out_specs=pl.BlockSpec((1, TH * W, ctot), lambda n, h: (n, h, 0)),
        scratch_shapes=[
            pltpu.VMEM((TH + 2, W + 2, cin), jnp.float32),             # padded rows
            pltpu.VMEM((TH, W, k_pad), jnp.float32),                   # im2col patch
        ],
        compiler_params=pltpu.CompilerParams(
            dimension_semantics=("parallel", "parallel"),
            vmem_limit_bytes=32 * 1024 * 1024),
    )(x_nhwc, x_nhwc, x_nhwc, w2d, b2d)

    # Fold pixel_shuffle into the single mandatory layout transpose back to NCHW.
    # (N, H*W, Ctot) -> (N, H, W, out_feat, r, r) is a free row-major view.
    y6 = y3.reshape(N, H, W, out_feat, r, r)
    out = jnp.transpose(y6, (0, 3, 1, 4, 2, 5)).reshape(N, out_feat, H * r, W * r)
    return out.astype(x_nchw.dtype)


# ---------------------------------------------------------------------------
# Pure-JAX reference (correctness check only)
# ---------------------------------------------------------------------------
def _ref_forward(x_nchw, weight_oihw, bias, r):
    y = lax.conv_general_dilated(
        x_nchw, weight_oihw, window_strides=(1, 1),
        padding=[(1, 1), (1, 1)],
        dimension_numbers=("NCHW", "OIHW", "NCHW"),
        precision=lax.Precision.HIGHEST)
    y = y + bias.reshape(1, -1, 1, 1)
    N, C, H, W = y.shape
    cf = C // (r * r)
    y = y.reshape(N, cf, r, r, H, W)
    y = jnp.transpose(y, (0, 1, 4, 2, 5, 3))
    return y.reshape(N, cf, H * r, W * r)


if __name__ == "__main__":
    key = jax.random.PRNGKey(0)
    k_x, k_w, k_b = jax.random.split(key, 3)

    # Small shapes consistent with the module.
    N, in_feat, H, W = 2, 4, 16, 16
    out_feat, scale = 32, 2
    ctot = out_feat * scale * scale

    # Round x / w to bf16-representable f32 values: every MXU product is then exact, so the
    # tight tolerance below checks structure (padding / im2col / shuffle / accumulation)
    # independently of the MXU's f32 emulation policy.
    x = jax.random.normal(k_x, (N, in_feat, H, W), jnp.float32)
    x = x.astype(jnp.bfloat16).astype(jnp.float32)
    w = 0.1 * jax.random.normal(k_w, (ctot, in_feat, 3, 3), jnp.float32)
    w = w.astype(jnp.bfloat16).astype(jnp.float32)
    b = 0.01 * jax.random.normal(k_b, (ctot,), jnp.float32)

    ref = jax.block_until_ready(_ref_forward(x, w, b, scale))

    # Multi-row-block run (exercises the halo-tiled grid axis and boundary zero-fill).
    out = jax.block_until_ready(
        ps_upsample_forward(x, w, b, scale, rows_per_block=8))
    assert out.shape == (N, out_feat, H * scale, W * scale), out.shape
    assert jnp.allclose(out, ref, rtol=1e-5, atol=1e-5), \
        float(jnp.max(jnp.abs(out - ref)))

    # Default (auto-sized) row block.
    out2 = jax.block_until_ready(ps_upsample_forward(x, w, b, scale))
    assert jnp.allclose(out2, ref, rtol=1e-5, atol=1e-5), \
        float(jnp.max(jnp.abs(out2 - ref)))

    # Optional bf16 MXU-operand path (f32 accumulation, elementwise stays f32).
    out3 = jax.block_until_ready(
        ps_upsample_forward(x, w, b, scale, rows_per_block=8, use_bf16_mxu=True))
    assert jnp.allclose(out3, ref, rtol=1e-4, atol=1e-4), \
        float(jnp.max(jnp.abs(out3 - ref)))

    print("KERNEL_OK")
</pallas_src>

<mosaic_0001>
module attributes {stable_mosaic.version = 11 : i64} {
  func.func @_ps_upsample_kernel(%arg0: i32, %arg1: i32, %arg2: memref<1x8x16x4xf32, #tpu.memory_space<vmem>>, %arg3: memref<1x1x16x4xf32, #tpu.memory_space<vmem>>, %arg4: memref<1x1x16x4xf32, #tpu.memory_space<vmem>>, %arg5: memref<128x128xf32, #tpu.memory_space<vmem>>, %arg6: memref<1x128xf32, #tpu.memory_space<vmem>>, %arg7: memref<1x128x128xf32, #tpu.memory_space<vmem>>, %arg8: memref<10x18x4xf32, #tpu.memory_space<vmem>>, %arg9: memref<8x16x128xf32, #tpu.memory_space<vmem>>) attributes {dimension_semantics = [#tpu.dimension_semantics<parallel>, #tpu.dimension_semantics<parallel>], iteration_bounds = array<i64: 2, 2>, scalar_prefetch = 0 : i64, scratch_operands = 2 : i64, tpu.core_type = #tpu.core_type<tc>, window_params = [{transform_indices = @transform_0, window_bounds = array<i64: 1, 8, 16, 4>}, {transform_indices = @transform_1, window_bounds = array<i64: 1, 1, 16, 4>}, {transform_indices = @transform_2, window_bounds = array<i64: 1, 1, 16, 4>}, {pipeline_mode = #tpu.pipeline_mode<synchronous>, transform_indices = @transform_3, window_bounds = array<i64: 128, 128>}, {pipeline_mode = #tpu.pipeline_mode<synchronous>, transform_indices = @transform_4, window_bounds = array<i64: 1, 128>}, {transform_indices = @transform_5, window_bounds = array<i64: 1, 128, 128>}]} {
    %cst = arith.constant 0.000000e+00 : f32
    %0 = vector.broadcast %cst : f32 to vector<10x1x4xf32>
    %c0 = arith.constant 0 : index
    %c0_0 = arith.constant 0 : index
    %c0_1 = arith.constant 0 : index
    %1 = vector.load %arg8[%c0, %c0_0, %c0_1] : memref<10x18x4xf32, #tpu.memory_space<vmem>>, vector<10x1x4xf32>
    tpu.vector_store %arg8[%c0, %c0_0, %c0_1], %0 {strides = array<i32>} : memref<10x18x4xf32, #tpu.memory_space<vmem>>, vector<10x1x4xf32>,
    %cst_2 = arith.constant 0.000000e+00 : f32
    %2 = vector.broadcast %cst_2 : f32 to vector<10x1x4xf32>
    %c0_3 = arith.constant 0 : index
    %c17 = arith.constant 17 : index
    %c0_4 = arith.constant 0 : index
    %3 = vector.load %arg8[%c0_3, %c17, %c0_4] : memref<10x18x4xf32, #tpu.memory_space<vmem>>, vector<10x1x4xf32>
    tpu.vector_store %arg8[%c0_3, %c17, %c0_4], %2 {strides = array<i32>} : memref<10x18x4xf32, #tpu.memory_space<vmem>>, vector<10x1x4xf32>,
    %c0_i32 = arith.constant 0 : i32
    %4 = arith.cmpi sgt, %arg1, %c0_i32 : i32
    %c0_5 = arith.constant 0 : index
    %c0_6 = arith.constant 0 : index
    %c0_7 = arith.constant 0 : index
    %c0_8 = arith.constant 0 : index
    %5 = vector.load %arg3[%c0_5, %c0_6, %c0_7, %c0_8] : memref<1x1x16x4xf32, #tpu.memory_space<vmem>>, vector<1x1x16x4xf32>
    %6 = vector.shape_cast %5 : vector<1x1x16x4xf32> to vector<1x16x4xf32>
    %cst_9 = arith.constant 0.000000e+00 : f32
    %7 = vector.broadcast %cst_9 : f32 to vector<1x16x4xf32>
    %8 = arith.select %4, %6, %7 : vector<1x16x4xf32>
    %c1_i32 = arith.constant 1 : i32
    %9 = arith.cmpi slt, %arg1, %c1_i32 : i32
    %c0_10 = arith.constant 0 : index
    %c0_11 = arith.constant 0 : index
    %c0_12 = arith.constant 0 : index
    %c0_13 = arith.constant 0 : index
    %10 = vector.load %arg4[%c0_10, %c0_11, %c0_12, %c0_13] : memref<1x1x16x4xf32, #tpu.memory_space<vmem>>, vector<1x1x16x4xf32>
    %11 = vector.shape_cast %10 : vector<1x1x16x4xf32> to vector<1x16x4xf32>
    %cst_14 = arith.constant 0.000000e+00 : f32
    %12 = vector.broadcast %cst_14 : f32 to vector<1x16x4xf32>
    %13 = arith.select %9, %11, %12 : vector<1x16x4xf32>
    %c0_15 = arith.constant 0 : index
    %c1 = arith.constant 1 : index
    %c0_16 = arith.constant 0 : index
    %14 = vector.load %arg8[%c0_15, %c1, %c0_16] : memref<10x18x4xf32, #tpu.memory_space<vmem>>, vector<1x16x4xf32>
    tpu.vector_store %arg8[%c0_15, %c1, %c0_16], %8 {strides = array<i32>} : memref<10x18x4xf32, #tpu.memory_space<vmem>>, vector<1x16x4xf32>,
    %c9 = arith.constant 9 : index
    %c1_17 = arith.constant 1 : index
    %c0_18 = arith.constant 0 : index
    %15 = vector.load %arg8[%c9, %c1_17, %c0_18] : memref<10x18x4xf32, #tpu.memory_space<vmem>>, vector<1x16x4xf32>
    tpu.vector_store %arg8[%c9, %c1_17, %c0_18], %13 {strides = array<i32>} : memref<10x18x4xf32, #tpu.memory_space<vmem>>, vector<1x16x4xf32>,
    %c0_19 = arith.constant 0 : index
    %c0_20 = arith.constant 0 : index
    %c0_21 = arith.constant 0 : index
    %c0_22 = arith.constant 0 : index
    %16 = vector.load %arg2[%c0_19, %c0_20, %c0_21, %c0_22] : memref<1x8x16x4xf32, #tpu.memory_space<vmem>>, vector<1x8x16x4xf32>
    %17 = vector.shape_cast %16 : vector<1x8x16x4xf32> to vector<8x16x4xf32>
    %c1_23 = arith.constant 1 : index
    %c1_24 = arith.constant 1 : index
    %c0_25 = arith.constant 0 : index
    %18 = vector.load %arg8[%c1_23, %c1_24, %c0_25] : memref<10x18x4xf32, #tpu.memory_space<vmem>>, vector<8x16x4xf32>
    tpu.vector_store %arg8[%c1_23, %c1_24, %c0_25], %17 {strides = array<i32>} : memref<10x18x4xf32, #tpu.memory_space<vmem>>, vector<8x16x4xf32>,
    %cst_26 = arith.constant 0.000000e+00 : f32
    %19 = vector.broadcast %cst_26 : f32 to vector<8x16x92xf32>
    %c0_27 = arith.constant 0 : index
    %c0_28 = arith.constant 0 : index
    %c36 = arith.constant 36 : index
    %20 = vector.load %arg9[%c0_27, %c0_28, %c36] : memref<8x16x128xf32, #tpu.memory_space<vmem>>, vector<8x16x92xf32>
    tpu.vector_store %arg9[%c0_27, %c0_28, %c36], %19 {strides = array<i32>} : memref<8x16x128xf32, #tpu.memory_space<vmem>>, vector<8x16x92xf32>,
    %c0_29 = arith.constant 0 : index
    %c0_30 = arith.constant 0 : index
    %c0_31 = arith.constant 0 : index
    %21 = vector.load %arg8[%c0_29, %c0_30, %c0_31] : memref<10x18x4xf32, #tpu.memory_space<vmem>>, vector<8x16x4xf32>
    %c0_32 = arith.constant 0 : index
    %c0_33 = arith.constant 0 : index
    %c0_34 = arith.constant 0 : index
    %22 = vector.load %arg9[%c0_32, %c0_33, %c0_34] : memref<8x16x128xf32, #tpu.memory_space<vmem>>, vector<8x16x4xf32>
    tpu.vector_store %arg9[%c0_32, %c0_33, %c0_34], %21 {strides = array<i32>} : memref<8x16x128xf32, #tpu.memory_space<vmem>>, vector<8x16x4xf32>,
    %c0_35 = arith.constant 0 : index
    %c1_36 = arith.constant 1 : index
    %c0_37 = arith.constant 0 : index
    %23 = vector.load %arg8[%c0_35, %c1_36, %c0_37] : memref<10x18x4xf32, #tpu.memory_space<vmem>>, vector<8x16x4xf32>
    %c0_38 = arith.constant 0 : index
    %c0_39 = arith.constant 0 : index
    %c4 = arith.constant 4 : index
    %24 = vector.load %arg9[%c0_38, %c0_39, %c4] : memref<8x16x128xf32, #tpu.memory_space<vmem>>, vector<8x16x4xf32>
    tpu.vector_store %arg9[%c0_38, %c0_39, %c4], %23 {strides = array<i32>} : memref<8x16x128xf32, #tpu.memory_space<vmem>>, vector<8x16x4xf32>,
    %c0_40 = arith.constant 0 : index
    %c2 = arith.constant 2 : index
    %c0_41 = arith.constant 0 : index
    %25 = vector.load %arg8[%c0_40, %c2, %c0_41] : memref<10x18x4xf32, #tpu.memory_space<vmem>>, vector<8x16x4xf32>
    %c0_42 = arith.constant 0 : index
    %c0_43 = arith.constant 0 : index
    %c8 = arith.constant 8 : index
    %26 = vector.load %arg9[%c0_42, %c0_43, %c8] : memref<8x16x128xf32, #tpu.memory_space<vmem>>, vector<8x16x4xf32>
    tpu.vector_store %arg9[%c0_42, %c0_43, %c8], %25 {strides = array<i32>} : memref<8x16x128xf32, #tpu.memory_space<vmem>>, vector<8x16x4xf32>,
    %c1_44 = arith.constant 1 : index
    %c0_45 = arith.constant 0 : index
    %c0_46 = arith.constant 0 : index
    %27 = vector.load %arg8[%c1_44, %c0_45, %c0_46] : memref<10x18x4xf32, #tpu.memory_space<vmem>>, vector<8x16x4xf32>
    %c0_47 = arith.constant 0 : index
    %c0_48 = arith.constant 0 : index
    %c12 = arith.constant 12 : index
    %28 = vector.load %arg9[%c0_47, %c0_48, %c12] : memref<8x16x128xf32, #tpu.memory_space<vmem>>, vector<8x16x4xf32>
    tpu.vector_store %arg9[%c0_47, %c0_48, %c12], %27 {strides = array<i32>} : memref<8x16x128xf32, #tpu.memory_space<vmem>>, vector<8x16x4xf32>,
    %c1_49 = arith.constant 1 : index
    %c1_50 = arith.constant 1 : index
    %c0_51 = arith.constant 0 : index
    %29 = vector.load %arg8[%c1_49, %c1_50, %c0_51] : memref<10x18x4xf32, #tpu.memory_space<vmem>>, vector<8x16x4xf32>
    %c0_52 = arith.constant 0 : index
    %c0_53 = arith.constant 0 : index
    %c16 = arith.constant 16 : index
    %30 = vector.load %arg9[%c0_52, %c0_53, %c16] : memref<8x16x128xf32, #tpu.memory_space<vmem>>, vector<8x16x4xf32>
    tpu.vector_store %arg9[%c0_52, %c0_53, %c16], %29 {strides = array<i32>} : memref<8x16x128xf32, #tpu.memory_space<vmem>>, vector<8x16x4xf32>,
    %c1_54 = arith.constant 1 : index
    %c2_55 = arith.constant 2 : index
    %c0_56 = arith.constant 0 : index
    %31 = vector.load %arg8[%c1_54, %c2_55, %c0_56] : memref<10x18x4xf32, #tpu.memory_space<vmem>>, vector<8x16x4xf32>
    %c0_57 = arith.constant 0 : index
    %c0_58 = arith.constant 0 : index
    %c20 = arith.constant 20 : index
    %32 = vector.load %arg9[%c0_57, %c0_58, %c20] : memref<8x16x128xf32, #tpu.memory_space<vmem>>, vector<8x16x4xf32>
    tpu.vector_store %arg9[%c0_57, %c0_58, %c20], %31 {strides = array<i32>} : memref<8x16x128xf32, #tpu.memory_space<vmem>>, vector<8x16x4xf32>,
    %c2_59 = arith.constant 2 : index
    %c0_60 = arith.constant 0 : index
    %c0_61 = arith.constant 0 : index
    %33 = vector.load %arg8[%c2_59, %c0_60, %c0_61] : memref<10x18x4xf32, #tpu.memory_space<vmem>>, vector<8x16x4xf32>
    %c0_62 = arith.constant 0 : index
    %c0_63 = arith.constant 0 : index
    %c24 = arith.constant 24 : index
    %34 = vector.load %arg9[%c0_62, %c0_63, %c24] : memref<8x16x128xf32, #tpu.memory_space<vmem>>, vector<8x16x4xf32>
    tpu.vector_store %arg9[%c0_62, %c0_63, %c24], %33 {strides = array<i32>} : memref<8x16x128xf32, #tpu.memory_space<vmem>>, vector<8x16x4xf32>,
    %c2_64 = arith.constant 2 : index
    %c1_65 = arith.constant 1 : index
    %c0_66 = arith.constant 0 : index
    %35 = vector.load %arg8[%c2_64, %c1_65, %c0_66] : memref<10x18x4xf32, #tpu.memory_space<vmem>>, vector<8x16x4xf32>
    %c0_67 = arith.constant 0 : index
    %c0_68 = arith.constant 0 : index
    %c28 = arith.constant 28 : index
    %36 = vector.load %arg9[%c0_67, %c0_68, %c28] : memref<8x16x128xf32, #tpu.memory_space<vmem>>, vector<8x16x4xf32>
    tpu.vector_store %arg9[%c0_67, %c0_68, %c28], %35 {strides = array<i32>} : memref<8x16x128xf32, #tpu.memory_space<vmem>>, vector<8x16x4xf32>,
    %c2_69 = arith.constant 2 : index
    %c2_70 = arith.constant 2 : index
    %c0_71 = arith.constant 0 : index
    %37 = vector.load %arg8[%c2_69, %c2_70, %c0_71] : memref<10x18x4xf32, #tpu.memory_space<vmem>>, vector<8x16x4xf32>
    %c0_72 = arith.constant 0 : index
    %c0_73 = arith.constant 0 : index
    %c32 = arith.constant 32 : index
    %38 = vector.load %arg9[%c0_72, %c0_73, %c32] : memref<8x16x128xf32, #tpu.memory_space<vmem>>, vector<8x16x4xf32>
    tpu.vector_store %arg9[%c0_72, %c0_73, %c32], %37 {strides = array<i32>} : memref<8x16x128xf32, #tpu.memory_space<vmem>>, vector<8x16x4xf32>,
    %c0_74 = arith.constant 0 : index
    %c0_75 = arith.constant 0 : index
    %c0_76 = arith.constant 0 : index
    %39 = vector.load %arg9[%c0_74, %c0_75, %c0_76] : memref<8x16x128xf32, #tpu.memory_space<vmem>>, vector<8x16x128xf32>
    %40 = vector.shape_cast %39 : vector<8x16x128xf32> to vector<128x128xf32>
    %c0_77 = arith.constant 0 : index
    %c0_78 = arith.constant 0 : index
    %41 = vector.load %arg5[%c0_77, %c0_78] : memref<128x128xf32, #tpu.memory_space<vmem>>, vector<128x128xf32>
    %cst_79 = arith.constant dense<0.000000e+00> : vector<128x128xf32>
    %42 = tpu.matmul %40, %41, %cst_79 {dimension_numbers = #tpu.dot_dimension_numbers<[1], [0], [0], [1], [0, 0, 1, 1], [], []>} : vector<128x128xf32>, vector<128x128xf32>, vector<128x128xf32> -> vector<128x128xf32>
    %c0_80 = arith.constant 0 : index
    %c0_81 = arith.constant 0 : index
    %43 = vector.load %arg6[%c0_80, %c0_81] : memref<1x128xf32, #tpu.memory_space<vmem>>, vector<1x128xf32>
    %44 = vector.broadcast %43 : vector<1x128xf32> to vector<128x128xf32>
    %45 = arith.addf %42, %44 : vector<128x128xf32>
    %c0_82 = arith.constant 0 : index
    %c0_83 = arith.constant 0 : index
    %c0_84 = arith.constant 0 : index
    %46 = vector.load %arg7[%c0_82, %c0_83, %c0_84] : memref<1x128x128xf32, #tpu.memory_space<vmem>>, vector<1x128x128xf32>
    %47 = vector.shape_cast %46 : vector<1x128x128xf32> to vector<128x128xf32>
    %48 = vector.shape_cast %45 : vector<128x128xf32> to vector<1x128x128xf32>
    tpu.vector_store %arg7[%c0_82, %c0_83, %c0_84], %48 {strides = array<i32>} : memref<1x128x128xf32, #tpu.memory_space<vmem>>, vector<1x128x128xf32>,
    return
  }
  func.func @transform_0(%arg0: i32, %arg1: i32) -> (i32, i32, i32, i32) {
    %c0_i32 = arith.constant 0 : i32
    %c0_i32_0 = arith.constant 0 : i32
    %c0_i32_1 = arith.constant 0 : i32
    return %arg0, %arg1, %c0_i32, %c0_i32_0 : i32, i32, i32, i32
  }
  func.func @transform_1(%arg0: i32, %arg1: i32) -> (i32, i32, i32, i32) {
    %c8_i32 = arith.constant 8 : i32
    %0 = arith.muli %arg1, %c8_i32 : i32
    %c1_i32 = arith.constant 1 : i32
    %1 = arith.subi %0, %c1_i32 : i32
    %c0_i32 = arith.constant 0 : i32
    %2 = arith.maxsi %1, %c0_i32 : i32
    %c0_i32_0 = arith.constant 0 : i32
    %c0_i32_1 = arith.constant 0 : i32
    %c0_i32_2 = arith.constant 0 : i32
    return %arg0, %2, %c0_i32_0, %c0_i32_1 : i32, i32, i32, i32
  }
  func.func @transform_2(%arg0: i32, %arg1: i32) -> (i32, i32, i32, i32) {
    %c8_i32 = arith.constant 8 : i32
    %0 = arith.muli %arg1, %c8_i32 : i32
    %c8_i32_0 = arith.constant 8 : i32
    %1 = arith.addi %0, %c8_i32_0 : i32
    %c15_i32 = arith.constant 15 : i32
    %2 = arith.minsi %1, %c15_i32 : i32
    %c0_i32 = arith.constant 0 : i32
    %c0_i32_1 = arith.constant 0 : i32
    %c0_i32_2 = arith.constant 0 : i32
    return %arg0, %2, %c0_i32, %c0_i32_1 : i32, i32, i32, i32
  }
  func.func @transform_3(%arg0: i32, %arg1: i32) -> (i32, i32) {
    %c0_i32 = arith.constant 0 : i32
    %c0_i32_0 = arith.constant 0 : i32
    %c0_i32_1 = arith.constant 0 : i32
    return %c0_i32, %c0_i32_0 : i32, i32
  }
  func.func @transform_4(%arg0: i32, %arg1: i32) -> (i32, i32) {
    %c0_i32 = arith.constant 0 : i32
    %c0_i32_0 = arith.constant 0 : i32
    %c0_i32_1 = arith.constant 0 : i32
    return %c0_i32, %c0_i32_0 : i32, i32
  }
  func.func @transform_5(%arg0: i32, %arg1: i32) -> (i32, i32, i32) {
    %c0_i32 = arith.constant 0 : i32
    %c0_i32_0 = arith.constant 0 : i32
    return %arg0, %arg1, %c0_i32 : i32, i32, i32
  }
}

</mosaic_0001>

<llo_original>
// kernel: tpu_custom_call.1
$region0: #{tpu_custom_call.1}
  #allocation0 [shape = 'u32[]', space=smem, size = 0x4, offset = 0x4, fixed_abs, tag = 'smem constant byte address 0x4 - core index']
  #allocation1 [shape = 'u32[72,128]{1,0:T(1,128)}', space=vmem, size = 0x9000, scoped, tag = 'internal scratch']
  #allocation2 [shape = 'f32[10,18,4]{2,1,0:T(8,128)}', space=vmem, size = 0x1e000, scoped, tag = 'scratch operand']
  #allocation3 [shape = 'f32[8,16,128]{2,1,0:T(8,128)}', space=vmem, size = 0x10000, scoped, tag = 'scratch operand']
  %s0 = inlined_call_operand.vmem [shape: f32[2,16,16,4], index: 0, kind: input, shape index: {}]
  %s1 = inlined_call_operand.vmem [shape: f32[2,16,16,4], index: 1, kind: input, shape index: {}]
  %s2 = inlined_call_operand.vmem [shape: f32[2,16,16,4], index: 2, kind: input, shape index: {}]
  %s3 = inlined_call_operand.vmem [shape: f32[128,128], index: 3, kind: input, shape index: {}]
  %s4 = inlined_call_operand.vmem [shape: f32[1,128], index: 4, kind: input, shape index: {}]
  %s5 = inlined_call_operand.hbm [shape: f32[2,256,128], index: 5, kind: output, shape index: {}]
  %s6 = sld [smem:[#allocation0]]
  $region53: #{tpu_custom_call.1} parent=0
    _
  %s8 = ssub.s32 1, %s6
  %s9 = scalar_select 0, %s8, %s6
  $region1: #{tpu_custom_call.1} parent=0
    #allocation4 [shape = 'u8[131072]{0}', space=vmem, size = 0x20000, scoped, tag = 'output window, operand 0']
    #allocation5 [shape = 's32[2]{0}', space=sflag, size = 0x8, scoped, tag = 'scoped memory for tpu_custom_call.1']
    %10 = vsyncpa [#allocation5], 0
    %s11 = scalar_lea.sflag [#allocation5], 1
    %12 = vsyncpa %s11, 0
    loop: start=0, step=1, limit=6
    $region2: #{tpu_custom_call.1} parent=1 // loop_pre_header
      _
    $region3: #{tpu_custom_call.1} parent=1 // loop_header
      %s14 = sphi 0, %s18
      %p15 = scmp.ge.s32.totalorder %s14, 6
      %s21 = sphi 0, %s33
      %s22 = sphi 0, %s29
      %s23 = sphi 0, %s21
      %s24 = sphi 0, %s22
      %s25 = sphi 0, %s23
      %s26 = sphi 0, %s24
      %s38 = sphi 0, %s40
      %s41 = sphi 0, %s38
      %s42 = sphi 0, %s41
      %s58 = sphi 0, %s42
      %s74 = sphi 0, %s76
      %s77 = sphi 0, %s74
      %s78 = sphi 0, %s77
      %s94 = sphi 0, %s78
      %s110 = sphi 0, %s112
      %s113 = sphi 0, %s110
      %s114 = sphi 0, %s113
      %s130 = sphi 0, %s114
      %s134 = sphi 0, %s134
      %s136 = sphi 0, %s134
      %s137 = sphi 0, %s136
      %s151 = sphi 0, %s137
      %s155 = sphi 0, %s155
      %s157 = sphi 0, %s155
      %s158 = sphi 0, %s157
      %s172 = sphi 0, %s158
      %s180 = sphi 0, %s182
      %s183 = sphi 0, %s180
      %s184 = sphi 0, %s183
      %s200 = sphi 0, %s184
    $region4: #{tpu_custom_call.1} parent=1 // loop_header_branch
      %17 = sbr.rel (%p15) target = $region8
    $region5: #{tpu_custom_call.1} parent=1 // loop_body
      %s19 = ssub.s32 %s14, 1
      %s20 = ssub.s32 %s14, 2
      %s27 = sadd.s32 1, %s22
      %p28 = scmp.ge.s32.totalorder %s27, 2
      %s29 = scalar_select %p28, 0, %s27
      %s30 = sadd.s32 1, %s21
      %s31 = scalar_select %p28, %s30, %s21
      %p32 = scmp.ge.s32.totalorder %s31, 2
      %s33 = scalar_select %p32, 0, %s31
      %s34 = ssub.s32 %s21, %s33
      %s35 = ssub.s32 %s22, %s29
      %s36 = sor.u32 %s34, %s35
      %p37 = scmp.eq.s32.totalorder %s36, 0
      %s39 = sadd.s32 %s38, 1
      %s40 = scalar_select %p37, %s38, %s39
      %p43 = pneg %p37
      %p44 = scmp.eq.s32.totalorder %s14, 3
      %p45 = por %p43, %p44
      %p46 = scmp.ne.s32.totalorder %s38, %s41
      %p47 = scmp.eq.s32.totalorder %s14, 0
      %p48 = por %p46, %p47
      %p49 = scmp.ne.s32.totalorder %s38, %s41
      %p50 = scmp.eq.s32.totalorder %s19, 3
      %p51 = por %p49, %p50
      %p52 = scmp.ne.s32.totalorder %s41, %s42
      %p53 = scmp.eq.s32.totalorder %s19, 0
      %p54 = por %p52, %p53
      %p55 = scmp.ne.s32.totalorder %s41, %s42
      %p56 = scmp.eq.s32.totalorder %s20, 3
      %p57 = por %p55, %p56
      %p59 = scmp.ne.s32.totalorder %s42, %s58
      %p60 = scmp.eq.s32.totalorder %s20, 0
      %p61 = por %p59, %p60
      %s62 = smul.u32 %s22, 8
      %s63 = ssub.s32 %s62, 1
      %p64 = scmp.gt.s32.totalorder %s63, 0
      %s65 = scalar_select %p64, %s63, 0
      %s66 = smul.u32 %s29, 8
      %s67 = ssub.s32 %s66, 1
      %p68 = scmp.gt.s32.totalorder %s67, 0
      %s69 = scalar_select %p68, %s67, 0
      %s70 = ssub.s32 %s21, %s33
      %s71 = ssub.s32 %s65, %s69
      %s72 = sor.u32 %s70, %s71
      %p73 = scmp.eq.s32.totalorder %s72, 0
      %s75 = sadd.s32 %s74, 1
      %s76 = scalar_select %p73, %s74, %s75
      %p79 = pneg %p73
      %p80 = scmp.eq.s32.totalorder %s14, 3
      %p81 = por %p79, %p80
      %p82 = scmp.ne.s32.totalorder %s74, %s77
      %p83 = scmp.eq.s32.totalorder %s14, 0
      %p84 = por %p82, %p83
      %p85 = scmp.ne.s32.totalorder %s74, %s77
      %p86 = scmp.eq.s32.totalorder %s19, 3
      %p87 = por %p85, %p86
      %p88 = scmp.ne.s32.totalorder %s77, %s78
      %p89 = scmp.eq.s32.totalorder %s19, 0
      %p90 = por %p88, %p89
      %p91 = scmp.ne.s32.totalorder %s77, %s78
      %p92 = scmp.eq.s32.totalorder %s20, 3
      %p93 = por %p91, %p92
      %p95 = scmp.ne.s32.totalorder %s78, %s94
      %p96 = scmp.eq.s32.totalorder %s20, 0
      %p97 = por %p95, %p96
      %s98 = smul.u32 %s22, 8
      %s99 = sadd.s32 %s98, 8
      %p100 = scmp.lt.s32.totalorder %s99, 15
      %s101 = scalar_select %p100, %s99, 15
      %s102 = smul.u32 %s29, 8
      %s103 = sadd.s32 %s102, 8
      %p104 = scmp.lt.s32.totalorder %s103, 15
      %s105 = scalar_select %p104, %s103, 15
      %s106 = ssub.s32 %s21, %s33
      %s107 = ssub.s32 %s101, %s105
      %s108 = sor.u32 %s106, %s107
      %p109 = scmp.eq.s32.totalorder %s108, 0
      %s111 = sadd.s32 %s110, 1
      %s112 = scalar_select %p109, %s110, %s111
      %p115 = pneg %p109
      %p116 = scmp.eq.s32.totalorder %s14, 3
      %p117 = por %p115, %p116
      %p118 = scmp.ne.s32.totalorder %s110, %s113
      %p119 = scmp.eq.s32.totalorder %s14, 0
      %p120 = por %p118, %p119
      %p121 = scmp.ne.s32.totalorder %s110, %s113
      %p122 = scmp.eq.s32.totalorder %s19, 3
      %p123 = por %p121, %p122
      %p124 = scmp.ne.s32.totalorder %s113, %s114
      %p125 = scmp.eq.s32.totalorder %s19, 0
      %p126 = por %p124, %p125
      %p127 = scmp.ne.s32.totalorder %s113, %s114
      %p128 = scmp.eq.s32.totalorder %s20, 3
      %p129 = por %p127, %p128
      %p131 = scmp.ne.s32.totalorder %s114, %s130
      %p132 = scmp.eq.s32.totalorder %s20, 0
      %p133 = por %p131, %p132
      %s135 = sadd.s32 %s134, 1
      %p138 = scmp.eq.s32.totalorder %s14, 3
      %p139 = scmp.ne.s32.totalorder %s134, %s136
      %p140 = scmp.eq.s32.totalorder %s14, 0
      %p141 = por %p139, %p140
      %p142 = scmp.ne.s32.totalorder %s134, %s136
      %p143 = scmp.eq.s32.totalorder %s19, 3
      %p144 = por %p142, %p143
      %p145 = scmp.ne.s32.totalorder %s136, %s137
      %p146 = scmp.eq.s32.totalorder %s19, 0
      %p147 = por %p145, %p146
      %p148 = scmp.ne.s32.totalorder %s136, %s137
      %p149 = scmp.eq.s32.totalorder %s20, 3
      %p150 = por %p148, %p149
      %p152 = scmp.ne.s32.totalorder %s137, %s151
      %p153 = scmp.eq.s32.totalorder %s20, 0
      %p154 = por %p152, %p153
      %s156 = sadd.s32 %s155, 1
      %p159 = scmp.eq.s32.totalorder %s14, 3
      %p160 = scmp.ne.s32.totalorder %s155, %s157
      %p161 = scmp.eq.s32.totalorder %s14, 0
      %p162 = por %p160, %p161
      %p163 = scmp.ne.s32.totalorder %s155, %s157
      %p164 = scmp.eq.s32.totalorder %s19, 3
      %p165 = por %p163, %p164
      %p166 = scmp.ne.s32.totalorder %s157, %s158
      %p167 = scmp.eq.s32.totalorder %s19, 0
      %p168 = por %p166, %p167
      %p169 = scmp.ne.s32.totalorder %s157, %s158
      %p170 = scmp.eq.s32.totalorder %s20, 3
      %p171 = por %p169, %p170
      %p173 = scmp.ne.s32.totalorder %s158, %s172
      %p174 = scmp.eq.s32.totalorder %s20, 0
      %p175 = por %p173, %p174
      %s176 = ssub.s32 %s21, %s33
      %s177 = ssub.s32 %s22, %s29
      %s178 = sor.u32 %s176, %s177
      %p179 = scmp.eq.s32.totalorder %s178, 0
      %s181 = sadd.s32 %s180, 1
      %s182 = scalar_select %p179, %s180, %s181
      %p185 = pneg %p179
      %p186 = scmp.eq.s32.totalorder %s14, 3
      %p187 = por %p185, %p186
      %p188 = scmp.ne.s32.totalorder %s180, %s183
      %p189 = scmp.eq.s32.totalorder %s14, 0
      %p190 = por %p188, %p189
      %p191 = scmp.ne.s32.totalorder %s180, %s183
      %p192 = scmp.eq.s32.totalorder %s19, 3
      %p193 = por %p191, %p192
      %p194 = scmp.ne.s32.totalorder %s183, %s184
      %p195 = scmp.eq.s32.totalorder %s19, 0
      %p196 = por %p194, %p195
      %p197 = scmp.ne.s32.totalorder %s183, %s184
      %p198 = scmp.eq.s32.totalorder %s20, 3
      %p199 = por %p197, %p198
      %p201 = scmp.ne.s32.totalorder %s184, %s200
      %p202 = scmp.eq.s32.totalorder %s20, 0
      %p203 = por %p201, %p202
      %p204 = scmp.le.s32.totalorder 1, %s14
      %p205 = scmp.lt.s32.totalorder %s14, 5
      %p206 = pnand %p204, %p205
      %p207 = pneg %p206
      // Predicated region
      $region9: #{tpu_custom_call.1} parent=5 // pred_check
        _
      $region10: #{tpu_custom_call.1} parent=5 // pred_check_branch
        %209 = sbr.rel (%p206) target = $region12
      $region11: #{tpu_custom_call.1} parent=5 // pred_region
        %s210 = ssub.s32 %s14, 1
        // Predicated region
        $region13: #{tpu_custom_call.1} parent=11 // pred_check
          %p211 = pneg %p147
        $region14: #{tpu_custom_call.1} parent=11 // pred_check_branch
          %213 = sbr.rel (%p211) target = $region16
        $region15: #{tpu_custom_call.1} parent=11 // pred_region
          _
        $region16: #{tpu_custom_call.1} parent=11 // pred_fallthru
          _
        // Predicated region
        $region17: #{tpu_custom_call.1} parent=11 // pred_check
          %p214 = pneg %p168
        $region18: #{tpu_custom_call.1} parent=11 // pred_check_branch
          %216 = sbr.rel (%p214) target = $region20
        $region19: #{tpu_custom_call.1} parent=11 // pred_region
          _
        $region20: #{tpu_custom_call.1} parent=11 // pred_fallthru
          _
      $region12: #{tpu_custom_call.1} parent=5 // pred_fallthru
        _
      %p217 = scmp.lt.s32.totalorder %s14, 4
      // Predicated region
      $region21: #{tpu_custom_call.1} parent=5 // pred_check
        %p218 = pneg %p217
      $region22: #{tpu_custom_call.1} parent=5 // pred_check_branch
        %220 = sbr.rel (%p218) target = $region24
      $region23: #{tpu_custom_call.1} parent=5 // pred_region
        // Predicated region
        $region25: #{tpu_custom_call.1} parent=23 // pred_check
          %p221 = pneg %p48
        $region26: #{tpu_custom_call.1} parent=23 // pred_check_branch
          %223 = sbr.rel (%p221) target = $region28
        $region27: #{tpu_custom_call.1} parent=23 // pred_region
          %s224 = smul.u32 8, %s22
          %p225 = scmp.lt.s32.totalorder %s21, 1
          %s226 = scalar_select %p225, %s21, 1
          %p227 = scmp.lt.s32.totalorder %s224, 15
          %s228 = scalar_select %p227, %s224, 15
          %s229 = smul.addr %s228, 2
          %s230 = smul.addr %s226, 32
          %s231 = sadd.s32 %s229, %s230
          %s232 = smul.addr %s231, 8
          %s233 = scalar_lea.vmem %s0, %s232
          %s234 = smul.u32 8, %s22
        $region28: #{tpu_custom_call.1} parent=23 // pred_fallthru
          _
        // Predicated region
        $region29: #{tpu_custom_call.1} parent=23 // pred_check
          %p235 = pneg %p84
        $region30: #{tpu_custom_call.1} parent=23 // pred_check_branch
          %237 = sbr.rel (%p235) target = $region32
        $region31: #{tpu_custom_call.1} parent=23 // pred_region
          %s238 = smul.u32 %s22, 8
          %s239 = ssub.s32 %s238, 1
          %p240 = scmp.gt.s32.totalorder %s239, 0
          %s241 = scalar_select %p240, %s239, 0
          %p242 = scmp.lt.s32.totalorder %s21, 1
          %s243 = scalar_select %p242, %s21, 1
          %p244 = scmp.lt.s32.totalorder %s241, 15
          %s245 = scalar_select %p244, %s241, 15
          %s246 = smul.addr %s245, 2
          %s247 = smul.addr %s243, 32
          %s248 = sadd.s32 %s246, %s247
          %s249 = smul.addr %s248, 8
          %s250 = scalar_lea.vmem %s1, %s249
          %s251 = smul.u32 %s22, 8
          %s252 = ssub.s32 %s251, 1
          %p253 = scmp.gt.s32.totalorder %s252, 0
          %s254 = scalar_select %p253, %s252, 0
        $region32: #{tpu_custom_call.1} parent=23 // pred_fallthru
          _
        // Predicated region
        $region33: #{tpu_custom_call.1} parent=23 // pred_check
          %p255 = pneg %p120
        $region34: #{tpu_custom_call.1} parent=23 // pred_check_branch
          %257 = sbr.rel (%p255) target = $region36
        $region35: #{tpu_custom_call.1} parent=23 // pred_region
          %s258 = smul.u32 %s22, 8
          %s259 = sadd.s32 %s258, 8
          %p260 = scmp.lt.s32.totalorder %s259, 15
          %s261 = scalar_select %p260, %s259, 15
          %p262 = scmp.lt.s32.totalorder %s21, 1
          %s263 = scalar_select %p262, %s21, 1
          %p264 = scmp.lt.s32.totalorder %s261, 15
          %s265 = scalar_select %p264, %s261, 15
          %s266 = smul.addr %s265, 2
          %s267 = smul.addr %s263, 32
          %s268 = sadd.s32 %s266, %s267
          %s269 = smul.addr %s268, 8
          %s270 = scalar_lea.vmem %s2, %s269
          %s271 = smul.u32 %s22, 8
          %s272 = sadd.s32 %s271, 8
          %p273 = scmp.lt.s32.totalorder %s272, 15
          %s274 = scalar_select %p273, %s272, 15
        $region36: #{tpu_custom_call.1} parent=23 // pred_fallthru
          _
      $region24: #{tpu_custom_call.1} parent=5 // pred_fallthru
        _
      %p275 = scmp.le.s32.totalorder 1, %s14
      %p276 = scmp.lt.s32.totalorder %s14, 5
      %p277 = pnand %p275, %p276
      %p278 = pneg %p277
      // Predicated region
      $region37: #{tpu_custom_call.1} parent=5 // pred_check
        _
      $region38: #{tpu_custom_call.1} parent=5 // pred_check_branch
        %280 = sbr.rel (%p277) target = $region40
      $region39: #{tpu_custom_call.1} parent=5 // pred_region
        %s281 = ssub.s32 %s14, 1
        %s282 = smul.u32 8, %s24
        %p283 = scmp.lt.s32.totalorder %s23, 1
        %s284 = scalar_select %p283, %s23, 1
        %p285 = scmp.lt.s32.totalorder %s282, 15
        %s286 = scalar_select %p285, %s282, 15
        %s287 = smul.addr %s286, 2
        %s288 = smul.addr %s284, 32
        %s289 = sadd.s32 %s287, %s288
        %s290 = smul.addr %s289, 8
        %s291 = scalar_lea.vmem %s0, %s290
        %p292 = pneg %p54
        %p293 = pneg %p51
        %s294 = smul.u32 %s24, 8
        %s295 = ssub.s32 %s294, 1
        %p296 = scmp.gt.s32.totalorder %s295, 0
        %s297 = scalar_select %p296, %s295, 0
        %p298 = scmp.lt.s32.totalorder %s23, 1
        %s299 = scalar_select %p298, %s23, 1
        %p300 = scmp.lt.s32.totalorder %s297, 15
        %s301 = scalar_select %p300, %s297, 15
        %s302 = smul.addr %s301, 2
        %s303 = smul.addr %s299, 32
        %s304 = sadd.s32 %s302, %s303
        %s305 = smul.addr %s304, 8
        %s306 = scalar_lea.vmem %s1, %s305
        %p307 = pneg %p90
        %p308 = pneg %p87
        %s309 = smul.u32 %s24, 8
        %s310 = sadd.s32 %s309, 8
        %p311 = scmp.lt.s32.totalorder %s310, 15
        %s312 = scalar_select %p311, %s310, 15
        %p313 = scmp.lt.s32.totalorder %s23, 1
        %s314 = scalar_select %p313, %s23, 1
        %p315 = scmp.lt.s32.totalorder %s312, 15
        %s316 = scalar_select %p315, %s312, 15
        %s317 = smul.addr %s316, 2
        %s318 = smul.addr %s314, 32
        %s319 = sadd.s32 %s317, %s318
        %s320 = smul.addr %s319, 8
        %s321 = scalar_lea.vmem %s2, %s320
        %p322 = pneg %p126
        %p323 = pneg %p123
        %p324 = pneg %p147
        %p325 = pneg %p144
        %p326 = pneg %p168
        %p327 = pneg %p165
        %p328 = pneg %p196
        %p329 = pneg %p193
        %s330 = sand.u32 %s183, 1
        %s331 = scalar_lea.sflag [#allocation5], %s330
        %s332 = sand.u32 %s183, 1
        %s333 = smul.addr %s332, 128
        %s334 = scalar_lea.vmem [#allocation4], %s333
        %s335 = smul.u32 8, %s24
        %p336 = scmp.lt.s32.totalorder %s23, 1
        %s337 = scalar_select %p336, %s23, 1
        %p338 = scmp.lt.s32.totalorder %s335, 15
        %s339 = scalar_select %p338, %s335, 15
        %s340 = smul.addr %s339, 2
        %s341 = smul.addr %s337, 32
        %s342 = sadd.s32 %s340, %s341
        %s343 = smul.addr %s342, 8
        %s344 = scalar_lea.vmem %s0, %s343
        %s345 = smul.u32 8, %s24
        %s346 = smul.u32 %s24, 8
        %s347 = ssub.s32 %s346, 1
        %p348 = scmp.gt.s32.totalorder %s347, 0
        %s349 = scalar_select %p348, %s347, 0
        %p350 = scmp.lt.s32.totalorder %s23, 1
        %s351 = scalar_select %p350, %s23, 1
        %p352 = scmp.lt.s32.totalorder %s349, 15
        %s353 = scalar_select %p352, %s349, 15
        %s354 = smul.addr %s353, 2
        %s355 = smul.addr %s351, 32
        %s356 = sadd.s32 %s354, %s355
        %s357 = smul.addr %s356, 8
        %s358 = scalar_lea.vmem %s1, %s357
        %s359 = smul.u32 %s24, 8
        %s360 = ssub.s32 %s359, 1
        %p361 = scmp.gt.s32.totalorder %s360, 0
        %s362 = scalar_select %p361, %s360, 0
        %s363 = smul.u32 %s24, 8
        %s364 = sadd.s32 %s363, 8
        %p365 = scmp.lt.s32.totalorder %s364, 15
        %s366 = scalar_select %p365, %s364, 15
        %p367 = scmp.lt.s32.totalorder %s23, 1
        %s368 = scalar_select %p367, %s23, 1
        %p369 = scmp.lt.s32.totalorder %s366, 15
        %s370 = scalar_select %p369, %s366, 15
        %s371 = smul.addr %s370, 2
        %s372 = smul.addr %s368, 32
        %s373 = sadd.s32 %s371, %s372
        %s374 = smul.addr %s373, 8
        %s375 = scalar_lea.vmem %s2, %s374
        %s376 = smul.u32 %s24, 8
        %s377 = sadd.s32 %s376, 8
        %p378 = scmp.lt.s32.totalorder %s377, 15
        %s379 = scalar_select %p378, %s377, 15
        %s380 = smul.u32 16, %s24
        %vm381 = vcmask 24576
        %382 = vst.msk [vmem:[#allocation2] sm:$0x1] %vm381, 0.0
        %383 = vst.msk [vmem:[#allocation2 + $0x18] sm:$0x1] %vm381, 0.0
        %384 = vst.msk [vmem:[#allocation2 + $0x30] sm:$0x1] %vm381, 0.0
        %385 = vst.msk [vmem:[#allocation2 + $0x48] sm:$0x1] %vm381, 0.0
        %386 = vst.msk [vmem:[#allocation2 + $0x60] sm:$0x1] %vm381, 0.0
        %387 = vst.msk [vmem:[#allocation2 + $0x78] sm:$0x1] %vm381, 0.0
        %388 = vst.msk [vmem:[#allocation2 + $0x90] sm:$0x1] %vm381, 0.0
        %389 = vst.msk [vmem:[#allocation2 + $0xa8] sm:$0x1] %vm381, 0.0
        %390 = vst.msk [vmem:[#allocation2 + $0xc0] sm:$0x1] %vm381, 0.0
        %391 = vst.msk [vmem:[#allocation2 + $0xd8] sm:$0x1] %vm381, 0.0
        %392 = vst.msk [vmem:[#allocation2 + $0x11] sm:$0x1] %vm381, 0.0
        %393 = vst.msk [vmem:[#allocation2 + $0x29] sm:$0x1] %vm381, 0.0
        %394 = vst.msk [vmem:[#allocation2 + $0x41] sm:$0x1] %vm381, 0.0
        %395 = vst.msk [vmem:[#allocation2 + $0x59] sm:$0x1] %vm381, 0.0
        %396 = vst.msk [vmem:[#allocation2 + $0x71] sm:$0x1] %vm381, 0.0
        %397 = vst.msk [vmem:[#allocation2 + $0x89] sm:$0x1] %vm381, 0.0
        %398 = vst.msk [vmem:[#allocation2 + $0xa1] sm:$0x1] %vm381, 0.0
        %399 = vst.msk [vmem:[#allocation2 + $0xb9] sm:$0x1] %vm381, 0.0
        %400 = vst.msk [vmem:[#allocation2 + $0xd1] sm:$0x1] %vm381, 0.0
        %401 = vst.msk [vmem:[#allocation2 + $0xe9] sm:$0x1] %vm381, 0.0
        %p402 = scmp.gt.s32.totalorder %s24, 0
        %v403 = vld [vmem:[%s358] sm:$0xff]
        %v404 = vld [vmem:[%s358 + $0x8] sm:$0xff]
        %s405 = scalar_select %p402, 1, 0
        %v406 = vstv %s405
        %vm407 = vcmp.eq.s32.totalorder %v406, 1
        %v408 = vsel %vm407, %v403, 0.0
        %v409 = vsel %vm407, %v404, 0.0
        %p410 = scmp.lt.s32.totalorder %s24, 1
        %v411 = vld [vmem:[%s375] sm:$0xff]
        %v412 = vld [vmem:[%s375 + $0x8] sm:$0xff]
        %s413 = scalar_select %p410, 1, 0
        %v414 = vstv %s413
        %vm415 = vcmp.eq.s32.totalorder %v414, 1
        %v416 = vsel %vm415, %v411, 0.0
        %v417 = vsel %vm415, %v412, 0.0
        %vm418 = vcmask 31744
        %419 = vst.msk [vmem:[#allocation2 + $0x1] sm:$0xff] %vm418, %v408
        %420 = vst.msk [vmem:[#allocation2 + $0x9] sm:$0xff] %vm418, %v409
        %s421 = scalar_lea.vmem [#allocation2], 216
        %422 = vst.msk [vmem:[%s421 + $0x1] sm:$0xff] %vm418, %v416
        %423 = vst.msk [vmem:[%s421 + $0x9] sm:$0xff] %vm418, %v417
        %v424 = vld [vmem:[%s344] sm:$0xff]
        %v425 = vld [vmem:[%s344 + $0x8] sm:$0xff]
        %v426 = vld [vmem:[%s344 + $0x10] sm:$0xff]
        %v427 = vld [vmem:[%s344 + $0x18] sm:$0xff]
        %v428 = vld [vmem:[%s344 + $0x20] sm:$0xff]
        %v429 = vld [vmem:[%s344 + $0x28] sm:$0xff]
        %v430 = vld [vmem:[%s344 + $0x30] sm:$0xff]
        %v431 = vld [vmem:[%s344 + $0x38] sm:$0xff]
        %v432 = vld [vmem:[%s344 + $0x40] sm:$0xff]
        %v433 = vld [vmem:[%s344 + $0x48] sm:$0xff]
        %v434 = vld [vmem:[%s344 + $0x50] sm:$0xff]
        %v435 = vld [vmem:[%s344 + $0x58] sm:$0xff]
        %v436 = vld [vmem:[%s344 + $0x60] sm:$0xff]
        %v437 = vld [vmem:[%s344 + $0x68] sm:$0xff]
        %v438 = vld [vmem:[%s344 + $0x70] sm:$0xff]
        %v439 = vld [vmem:[%s344 + $0x78] sm:$0xff]
        %s440 = scalar_lea.vmem [#allocation2], 24
        %441 = vst.msk [vmem:[%s440 + $0x1] sm:$0xff] %vm418, %v424
        %442 = vst.msk [vmem:[%s440 + $0x9] sm:$0xff] %vm418, %v425
        %443 = vst.msk [vmem:[%s440 + $0x19] sm:$0xff] %vm418, %v426
        %444 = vst.msk [vmem:[%s440 + $0x21] sm:$0xff] %vm418, %v427
        %445 = vst.msk [vmem:[%s440 + $0x31] sm:$0xff] %vm418, %v428
        %446 = vst.msk [vmem:[%s440 + $0x39] sm:$0xff] %vm418, %v429
        %447 = vst.msk [vmem:[%s440 + $0x49] sm:$0xff] %vm418, %v430
        %448 = vst.msk [vmem:[%s440 + $0x51] sm:$0xff] %vm418, %v431
        %449 = vst.msk [vmem:[%s440 + $0x61] sm:$0xff] %vm418, %v432
        %450 = vst.msk [vmem:[%s440 + $0x69] sm:$0xff] %vm418, %v433
        %451 = vst.msk [vmem:[%s440 + $0x79] sm:$0xff] %vm418, %v434
        %452 = vst.msk [vmem:[%s440 + $0x81] sm:$0xff] %vm418, %v435
        %453 = vst.msk [vmem:[%s440 + $0x91] sm:$0xff] %vm418, %v436
        %454 = vst.msk [vmem:[%s440 + $0x99] sm:$0xff] %vm418, %v437
        %455 = vst.msk [vmem:[%s440 + $0xa9] sm:$0xff] %vm418, %v438
        %456 = vst.msk [vmem:[%s440 + $0xb1] sm:$0xff] %vm418, %v439
        %vm457 = vcmask 1047840
        %458 = vst.msk [vmem:[#allocation3] sm:$0xff] %vm457, 0.0
        %459 = vst.msk [vmem:[#allocation3 + $0x8] sm:$0xff] %vm457, 0.0
        %460 = vst.msk [vmem:[#allocation3 + $0x10] sm:$0xff] %vm457, 0.0
        %461 = vst.msk [vmem:[#allocation3 + $0x18] sm:$0xff] %vm457, 0.0
        %462 = vst.msk [vmem:[#allocation3 + $0x20] sm:$0xff] %vm457, 0.0
        %463 = vst.msk [vmem:[#allocation3 + $0x28] sm:$0xff] %vm457, 0.0
        %464 = vst.msk [vmem:[#allocation3 + $0x30] sm:$0xff] %vm457, 0.0
        %465 = vst.msk [vmem:[#allocation3 + $0x38] sm:$0xff] %vm457, 0.0
        %466 = vst.msk [vmem:[#allocation3 + $0x40] sm:$0xff] %vm457, 0.0
        %467 = vst.msk [vmem:[#allocation3 + $0x48] sm:$0xff] %vm457, 0.0
        %468 = vst.msk [vmem:[#allocation3 + $0x50] sm:$0xff] %vm457, 0.0
        %469 = vst.msk [vmem:[#allocation3 + $0x58] sm:$0xff] %vm457, 0.0
        %470 = vst.msk [vmem:[#allocation3 + $0x60] sm:$0xff] %vm457, 0.0
        %471 = vst.msk [vmem:[#allocation3 + $0x68] sm:$0xff] %vm457, 0.0
        %472 = vst.msk [vmem:[#allocation3 + $0x70] sm:$0xff] %vm457, 0.0
        %473 = vst.msk [vmem:[#allocation3 + $0x78] sm:$0xff] %vm457, 0.0
        %v474 = vld [vmem:[#allocation2] sm:$0xff]
        %v475 = vld [vmem:[#allocation2 + $0x8] sm:$0xff]
        %v476 = vld [vmem:[#allocation2 + $0x18] sm:$0xff]
        %v477 = vld [vmem:[#allocation2 + $0x20] sm:$0xff]
        %v478 = vld [vmem:[#allocation2 + $0x30] sm:$0xff]
        %v479 = vld [vmem:[#allocation2 + $0x38] sm:$0xff]
        %v480 = vld [vmem:[#allocation2 + $0x48] sm:$0xff]
        %v481 = vld [vmem:[#allocation2 + $0x50] sm:$0xff]
        %v482 = vld [vmem:[#allocation2 + $0x60] sm:$0xff]
        %v483 = vld [vmem:[#allocation2 + $0x68] sm:$0xff]
        %v484 = vld [vmem:[#allocation2 + $0x78] sm:$0xff]
        %v485 = vld [vmem:[#allocation2 + $0x80] sm:$0xff]
        %v486 = vld [vmem:[#allocation2 + $0x90] sm:$0xff]
        %v487 = vld [vmem:[#allocation2 + $0x98] sm:$0xff]
        %v488 = vld [vmem:[#allocation2 + $0xa8] sm:$0xff]
        %v489 = vld [vmem:[#allocation2 + $0xb0] sm:$0xff]
        %490 = vst.msk [vmem:[#allocation3] sm:$0xff] %vm418, %v474
        %491 = vst.msk [vmem:[#allocation3 + $0x8] sm:$0xff] %vm418, %v475
        %492 = vst.msk [vmem:[#allocation3 + $0x10] sm:$0xff] %vm418, %v476
        %493 = vst.msk [vmem:[#allocation3 + $0x18] sm:$0xff] %vm418, %v477
        %494 = vst.msk [vmem:[#allocation3 + $0x20] sm:$0xff] %vm418, %v478
        %495 = vst.msk [vmem:[#allocation3 + $0x28] sm:$0xff] %vm418, %v479
        %496 = vst.msk [vmem:[#allocation3 + $0x30] sm:$0xff] %vm418, %v480
        %497 = vst.msk [vmem:[#allocation3 + $0x38] sm:$0xff] %vm418, %v481
        %498 = vst.msk [vmem:[#allocation3 + $0x40] sm:$0xff] %vm418, %v482
        %499 = vst.msk [vmem:[#allocation3 + $0x48] sm:$0xff] %vm418, %v483
        %500 = vst.msk [vmem:[#allocation3 + $0x50] sm:$0xff] %vm418, %v484
        %501 = vst.msk [vmem:[#allocation3 + $0x58] sm:$0xff] %vm418, %v485
        %502 = vst.msk [vmem:[#allocation3 + $0x60] sm:$0xff] %vm418, %v486
        %503 = vst.msk [vmem:[#allocation3 + $0x68] sm:$0xff] %vm418, %v487
        %504 = vst.msk [vmem:[#allocation3 + $0x70] sm:$0xff] %vm418, %v488
        %505 = vst.msk [vmem:[#allocation3 + $0x78] sm:$0xff] %vm418, %v489
        %v506 = vld [vmem:[#allocation2 + $0x1] sm:$0xff]
        %v507 = vld [vmem:[#allocation2 + $0x9] sm:$0xff]
        %v508 = vld [vmem:[#allocation2 + $0x19] sm:$0xff]
        %v509 = vld [vmem:[#allocation2 + $0x21] sm:$0xff]
        %v510 = vld [vmem:[#allocation2 + $0x31] sm:$0xff]
        %v511 = vld [vmem:[#allocation2 + $0x39] sm:$0xff]
        %v512 = vld [vmem:[#allocation2 + $0x49] sm:$0xff]
        %v513 = vld [vmem:[#allocation2 + $0x51] sm:$0xff]
        %v514 = vld [vmem:[#allocation2 + $0x61] sm:$0xff]
        %v515 = vld [vmem:[#allocation2 + $0x69] sm:$0xff]
        %v516 = vld [vmem:[#allocation2 + $0x79] sm:$0xff]
        %v517 = vld [vmem:[#allocation2 + $0x81] sm:$0xff]
        %v518 = vld [vmem:[#allocation2 + $0x91] sm:$0xff]
        %v519 = vld [vmem:[#allocation2 + $0x99] sm:$0xff]
        %v520 = vld [vmem:[#allocation2 + $0xa9] sm:$0xff]
        %v521 = vld [vmem:[#allocation2 + $0xb1] sm:$0xff]
        %538 = vrot.lane.b32.xlu0 %v506, 4
        %v539 = vpop.permute.xlu0 %538
        %540 = vrot.lane.b32.xlu0 %v507, 4
        %v541 = vpop.permute.xlu0 %540
        %542 = vrot.lane.b32.xlu0 %v508, 4
        %v543 = vpop.permute.xlu0 %542
        %544 = vrot.lane.b32.xlu0 %v509, 4
        %v545 = vpop.permute.xlu0 %544
        %546 = vrot.lane.b32.xlu0 %v510, 4
        %v547 = vpop.permute.xlu0 %546
        %548 = vrot.lane.b32.xlu0 %v511, 4
        %v549 = vpop.permute.xlu0 %548
        %550 = vrot.lane.b32.xlu0 %v512, 4
        %v551 = vpop.permute.xlu0 %550
        %552 = vrot.lane.b32.xlu0 %v513, 4
        %v553 = vpop.permute.xlu0 %552
        %554 = vrot.lane.b32.xlu0 %v514, 4
        %v555 = vpop.permute.xlu0 %554
        %556 = vrot.lane.b32.xlu0 %v515, 4
        %v557 = vpop.permute.xlu0 %556
        %558 = vrot.lane.b32.xlu0 %v516, 4
        %v559 = vpop.permute.xlu0 %558
        %560 = vrot.lane.b32.xlu0 %v517, 4
        %v561 = vpop.permute.xlu0 %560
        %562 = vrot.lane.b32.xlu0 %v518, 4
        %v563 = vpop.permute.xlu0 %562
        %564 = vrot.lane.b32.xlu0 %v519, 4
        %v565 = vpop.permute.xlu0 %564
        %566 = vrot.lane.b32.xlu0 %v520, 4
        %v567 = vpop.permute.xlu0 %566
        %568 = vrot.lane.b32.xlu0 %v521, 4
        %v569 = vpop.permute.xlu0 %568
        %vm586 = vcmask 64544
        %587 = vst.msk [vmem:[#allocation3] sm:$0xff] %vm586, %v539
        %588 = vst.msk [vmem:[#allocation3 + $0x8] sm:$0xff] %vm586, %v541
        %589 = vst.msk [vmem:[#allocation3 + $0x10] sm:$0xff] %vm586, %v543
        %590 = vst.msk [vmem:[#allocation3 + $0x18] sm:$0xff] %vm586, %v545
        %591 = vst.msk [vmem:[#allocation3 + $0x20] sm:$0xff] %vm586, %v547
        %592 = vst.msk [vmem:[#allocation3 + $0x28] sm:$0xff] %vm586, %v549
        %593 = vst.msk [vmem:[#allocation3 + $0x30] sm:$0xff] %vm586, %v551
        %594 = vst.msk [vmem:[#allocation3 + $0x38] sm:$0xff] %vm586, %v553
        %595 = vst.msk [vmem:[#allocation3 + $0x40] sm:$0xff] %vm586, %v555
        %596 = vst.msk [vmem:[#allocation3 + $0x48] sm:$0xff] %vm586, %v557
        %597 = vst.msk [vmem:[#allocation3 + $0x50] sm:$0xff] %vm586, %v559
        %598 = vst.msk [vmem:[#allocation3 + $0x58] sm:$0xff] %vm586, %v561
        %599 = vst.msk [vmem:[#allocation3 + $0x60] sm:$0xff] %vm586, %v563
        %600 = vst.msk [vmem:[#allocation3 + $0x68] sm:$0xff] %vm586, %v565
        %601 = vst.msk [vmem:[#allocation3 + $0x70] sm:$0xff] %vm586, %v567
        %602 = vst.msk [vmem:[#allocation3 + $0x78] sm:$0xff] %vm586, %v569
        %v603 = vld [vmem:[#allocation2 + $0x2] sm:$0xff]
        %v604 = vld [vmem:[#allocation2 + $0xa] sm:$0xff]
        %v605 = vld [vmem:[#allocation2 + $0x1a] sm:$0xff]
        %v606 = vld [vmem:[#allocation2 + $0x22] sm:$0xff]
        %v607 = vld [vmem:[#allocation2 + $0x32] sm:$0xff]
        %v608 = vld [vmem:[#allocation2 + $0x3a] sm:$0xff]
        %v609 = vld [vmem:[#allocation2 + $0x4a] sm:$0xff]
        %v610 = vld [vmem:[#allocation2 + $0x52] sm:$0xff]
        %v611 = vld [vmem:[#allocation2 + $0x62] sm:$0xff]
        %v612 = vld [vmem:[#allocation2 + $0x6a] sm:$0xff]
        %v613 = vld [vmem:[#allocation2 + $0x7a] sm:$0xff]
        %v614 = vld [vmem:[#allocation2 + $0x82] sm:$0xff]
        %v615 = vld [vmem:[#allocation2 + $0x92] sm:$0xff]
        %v616 = vld [vmem:[#allocation2 + $0x9a] sm:$0xff]
        %v617 = vld [vmem:[#allocation2 + $0xaa] sm:$0xff]
        %v618 = vld [vmem:[#allocation2 + $0xb2] sm:$0xff]
        %635 = vrot.lane.b32.xlu0 %v603, 8
        %v636 = vpop.permute.xlu0 %635
        %637 = vrot.lane.b32.xlu0 %v604, 8
        %v638 = vpop.permute.xlu0 %637
        %639 = vrot.lane.b32.xlu0 %v605, 8
        %v640 = vpop.permute.xlu0 %639
        %641 = vrot.lane.b32.xlu0 %v606, 8
        %v642 = vpop.permute.xlu0 %641
        %643 = vrot.lane.b32.xlu0 %v607, 8
        %v644 = vpop.permute.xlu0 %643
        %645 = vrot.lane.b32.xlu0 %v608, 8
        %v646 = vpop.permute.xlu0 %645
        %647 = vrot.lane.b32.xlu0 %v609, 8
        %v648 = vpop.permute.xlu0 %647
        %649 = vrot.lane.b32.xlu0 %v610, 8
        %v650 = vpop.permute.xlu0 %649
        %651 = vrot.lane.b32.xlu0 %v611, 8
        %v652 = vpop.permute.xlu0 %651
        %653 = vrot.lane.b32.xlu0 %v612, 8
        %v654 = vpop.permute.xlu0 %653
        %655 = vrot.lane.b32.xlu0 %v613, 8
        %v656 = vpop.permute.xlu0 %655
        %657 = vrot.lane.b32.xlu0 %v614, 8
        %v658 = vpop.permute.xlu0 %657
        %659 = vrot.lane.b32.xlu0 %v615, 8
        %v660 = vpop.permute.xlu0 %659
        %661 = vrot.lane.b32.xlu0 %v616, 8
        %v662 = vpop.permute.xlu0 %661
        %663 = vrot.lane.b32.xlu0 %v617, 8
        %v664 = vpop.permute.xlu0 %663
        %665 = vrot.lane.b32.xlu0 %v618, 8
        %v666 = vpop.permute.xlu0 %665
        %vm683 = vcmask 97344
        %684 = vst.msk [vmem:[#allocation3] sm:$0xff] %vm683, %v636
        %685 = vst.msk [vmem:[#allocation3 + $0x8] sm:$0xff] %vm683, %v638
        %686 = vst.msk [vmem:[#allocation3 + $0x10] sm:$0xff] %vm683, %v640
        %687 = vst.msk [vmem:[#allocation3 + $0x18] sm:$0xff] %vm683, %v642
        %688 = vst.msk [vmem:[#allocation3 + $0x20] sm:$0xff] %vm683, %v644
        %689 = vst.msk [vmem:[#allocation3 + $0x28] sm:$0xff] %vm683, %v646
        %690 = vst.msk [vmem:[#allocation3 + $0x30] sm:$0xff] %vm683, %v648
        %691 = vst.msk [vmem:[#allocation3 + $0x38] sm:$0xff] %vm683, %v650
        %692 = vst.msk [vmem:[#allocation3 + $0x40] sm:$0xff] %vm683, %v652
        %693 = vst.msk [vmem:[#allocation3 + $0x48] sm:$0xff] %vm683, %v654
        %694 = vst.msk [vmem:[#allocation3 + $0x50] sm:$0xff] %vm683, %v656
        %695 = vst.msk [vmem:[#allocation3 + $0x58] sm:$0xff] %vm683, %v658
        %696 = vst.msk [vmem:[#allocation3 + $0x60] sm:$0xff] %vm683, %v660
        %697 = vst.msk [vmem:[#allocation3 + $0x68] sm:$0xff] %vm683, %v662
        %698 = vst.msk [vmem:[#allocation3 + $0x70] sm:$0xff] %vm683, %v664
        %699 = vst.msk [vmem:[#allocation3 + $0x78] sm:$0xff] %vm683, %v666
        %v700 = vld [vmem:[%s440] sm:$0xff]
        %v701 = vld [vmem:[%s440 + $0x8] sm:$0xff]
        %v702 = vld [vmem:[%s440 + $0x18] sm:$0xff]
        %v703 = vld [vmem:[%s440 + $0x20] sm:$0xff]
        %v704 = vld [vmem:[%s440 + $0x30] sm:$0xff]
        %v705 = vld [vmem:[%s440 + $0x38] sm:$0xff]
        %v706 = vld [vmem:[%s440 + $0x48] sm:$0xff]
        %v707 = vld [vmem:[%s440 + $0x50] sm:$0xff]
        %v708 = vld [vmem:[%s440 + $0x60] sm:$0xff]
        %v709 = vld [vmem:[%s440 + $0x68] sm:$0xff]
        %v710 = vld [vmem:[%s440 + $0x78] sm:$0xff]
        %v711 = vld [vmem:[%s440 + $0x80] sm:$0xff]
        %v712 = vld [vmem:[%s440 + $0x90] sm:$0xff]
        %v713 = vld [vmem:[%s440 + $0x98] sm:$0xff]
        %v714 = vld [vmem:[%s440 + $0xa8] sm:$0xff]
        %v715 = vld [vmem:[%s440 + $0xb0] sm:$0xff]
        %732 = vrot.lane.b32.xlu0 %v700, 12
        %v733 = vpop.permute.xlu0 %732
        %734 = vrot.lane.b32.xlu0 %v701, 12
        %v735 = vpop.permute.xlu0 %734
        %736 = vrot.lane.b32.xlu0 %v702, 12
        %v737 = vpop.permute.xlu0 %736
        %738 = vrot.lane.b32.xlu0 %v703, 12
        %v739 = vpop.permute.xlu0 %738
        %740 = vrot.lane.b32.xlu0 %v704, 12
        %v741 = vpop.permute.xlu0 %740
        %742 = vrot.lane.b32.xlu0 %v705, 12
        %v743 = vpop.permute.xlu0 %742
        %744 = vrot.lane.b32.xlu0 %v706, 12
        %v745 = vpop.permute.xlu0 %744
        %746 = vrot.lane.b32.xlu0 %v707, 12
        %v747 = vpop.permute.xlu0 %746
        %748 = vrot.lane.b32.xlu0 %v708, 12
        %v749 = vpop.permute.xlu0 %748
        %750 = vrot.lane.b32.xlu0 %v709, 12
        %v751 = vpop.permute.xlu0 %750
        %752 = vrot.lane.b32.xlu0 %v710, 12
        %v753 = vpop.permute.xlu0 %752
        %754 = vrot.lane.b32.xlu0 %v711, 12
        %v755 = vpop.permute.xlu0 %754
        %756 = vrot.lane.b32.xlu0 %v712, 12
        %v757 = vpop.permute.xlu0 %756
        %758 = vrot.lane.b32.xlu0 %v713, 12
        %v759 = vpop.permute.xlu0 %758
        %760 = vrot.lane.b32.xlu0 %v714, 12
        %v761 = vpop.permute.xlu0 %760
        %762 = vrot.lane.b32.xlu0 %v715, 12
        %v763 = vpop.permute.xlu0 %762
        %vm780 = vcmask 130144
        %781 = vst.msk [vmem:[#allocation3] sm:$0xff] %vm780, %v733
        %782 = vst.msk [vmem:[#allocation3 + $0x8] sm:$0xff] %vm780, %v735
        %783 = vst.msk [vmem:[#allocation3 + $0x10] sm:$0xff] %vm780, %v737
        %784 = vst.msk [vmem:[#allocation3 + $0x18] sm:$0xff] %vm780, %v739
        %785 = vst.msk [vmem:[#allocation3 + $0x20] sm:$0xff] %vm780, %v741
        %786 = vst.msk [vmem:[#allocation3 + $0x28] sm:$0xff] %vm780, %v743
        %787 = vst.msk [vmem:[#allocation3 + $0x30] sm:$0xff] %vm780, %v745
        %788 = vst.msk [vmem:[#allocation3 + $0x38] sm:$0xff] %vm780, %v747
        %789 = vst.msk [vmem:[#allocation3 + $0x40] sm:$0xff] %vm780, %v749
        %790 = vst.msk [vmem:[#allocation3 + $0x48] sm:$0xff] %vm780, %v751
        %791 = vst.msk [vmem:[#allocation3 + $0x50] sm:$0xff] %vm780, %v753
        %792 = vst.msk [vmem:[#allocation3 + $0x58] sm:$0xff] %vm780, %v755
        %793 = vst.msk [vmem:[#allocation3 + $0x60] sm:$0xff] %vm780, %v757
        %794 = vst.msk [vmem:[#allocation3 + $0x68] sm:$0xff] %vm780, %v759
        %795 = vst.msk [vmem:[#allocation3 + $0x70] sm:$0xff] %vm780, %v761
        %796 = vst.msk [vmem:[#allocation3 + $0x78] sm:$0xff] %vm780, %v763
        %v797 = vld [vmem:[%s440 + $0x1] sm:$0xff]
        %v798 = vld [vmem:[%s440 + $0x9] sm:$0xff]
        %v799 = vld [vmem:[%s440 + $0x19] sm:$0xff]
        %v800 = vld [vmem:[%s440 + $0x21] sm:$0xff]
        %v801 = vld [vmem:[%s440 + $0x31] sm:$0xff]
        %v802 = vld [vmem:[%s440 + $0x39] sm:$0xff]
        %v803 = vld [vmem:[%s440 + $0x49] sm:$0xff]
        %v804 = vld [vmem:[%s440 + $0x51] sm:$0xff]
        %v805 = vld [vmem:[%s440 + $0x61] sm:$0xff]
        %v806 = vld [vmem:[%s440 + $0x69] sm:$0xff]
        %v807 = vld [vmem:[%s440 + $0x79] sm:$0xff]
        %v808 = vld [vmem:[%s440 + $0x81] sm:$0xff]
        %v809 = vld [vmem:[%s440 + $0x91] sm:$0xff]
        %v810 = vld [vmem:[%s440 + $0x99] sm:$0xff]
        %v811 = vld [vmem:[%s440 + $0xa9] sm:$0xff]
        %v812 = vld [vmem:[%s440 + $0xb1] sm:$0xff]
        %829 = vrot.lane.b32.xlu0 %v797, 16
        %v830 = vpop.permute.xlu0 %829
        %831 = vrot.lane.b32.xlu0 %v798, 16
        %v832 = vpop.permute.xlu0 %831
        %833 = vrot.lane.b32.xlu0 %v799, 16
        %v834 = vpop.permute.xlu0 %833
        %835 = vrot.lane.b32.xlu0 %v800, 16
        %v836 = vpop.permute.xlu0 %835
        %837 = vrot.lane.b32.xlu0 %v801, 16
        %v838 = vpop.permute.xlu0 %837
        %839 = vrot.lane.b32.xlu0 %v802, 16
        %v840 = vpop.permute.xlu0 %839
        %841 = vrot.lane.b32.xlu0 %v803, 16
        %v842 = vpop.permute.xlu0 %841
        %843 = vrot.lane.b32.xlu0 %v804, 16
        %v844 = vpop.permute.xlu0 %843
        %845 = vrot.lane.b32.xlu0 %v805, 16
        %v846 = vpop.permute.xlu0 %845
        %847 = vrot.lane.b32.xlu0 %v806, 16
        %v848 = vpop.permute.xlu0 %847
        %849 = vrot.lane.b32.xlu0 %v807, 16
        %v850 = vpop.permute.xlu0 %849
        %851 = vrot.lane.b32.xlu0 %v808, 16
        %v852 = vpop.permute.xlu0 %851
        %853 = vrot.lane.b32.xlu0 %v809, 16
        %v854 = vpop.permute.xlu0 %853
        %855 = vrot.lane.b32.xlu0 %v810, 16
        %v856 = vpop.permute.xlu0 %855
        %857 = vrot.lane.b32.xlu0 %v811, 16
        %v858 = vpop.permute.xlu0 %857
        %859 = vrot.lane.b32.xlu0 %v812, 16
        %v860 = vpop.permute.xlu0 %859
        %vm877 = vcmask 162944
        %878 = vst.msk [vmem:[#allocation3] sm:$0xff] %vm877, %v830
        %879 = vst.msk [vmem:[#allocation3 + $0x8] sm:$0xff] %vm877, %v832
        %880 = vst.msk [vmem:[#allocation3 + $0x10] sm:$0xff] %vm877, %v834
        %881 = vst.msk [vmem:[#allocation3 + $0x18] sm:$0xff] %vm877, %v836
        %882 = vst.msk [vmem:[#allocation3 + $0x20] sm:$0xff] %vm877, %v838
        %883 = vst.msk [vmem:[#allocation3 + $0x28] sm:$0xff] %vm877, %v840
        %884 = vst.msk [vmem:[#allocation3 + $0x30] sm:$0xff] %vm877, %v842
        %885 = vst.msk [vmem:[#allocation3 + $0x38] sm:$0xff] %vm877, %v844
        %886 = vst.msk [vmem:[#allocation3 + $0x40] sm:$0xff] %vm877, %v846
        %887 = vst.msk [vmem:[#allocation3 + $0x48] sm:$0xff] %vm877, %v848
        %888 = vst.msk [vmem:[#allocation3 + $0x50] sm:$0xff] %vm877, %v850
        %889 = vst.msk [vmem:[#allocation3 + $0x58] sm:$0xff] %vm877, %v852
        %890 = vst.msk [vmem:[#allocation3 + $0x60] sm:$0xff] %vm877, %v854
        %891 = vst.msk [vmem:[#allocation3 + $0x68] sm:$0xff] %vm877, %v856
        %892 = vst.msk [vmem:[#allocation3 + $0x70] sm:$0xff] %vm877, %v858
        %893 = vst.msk [vmem:[#allocation3 + $0x78] sm:$0xff] %vm877, %v860
        %v894 = vld [vmem:[%s440 + $0x2] sm:$0xff]
        %v895 = vld [vmem:[%s440 + $0xa] sm:$0xff]
        %v896 = vld [vmem:[%s440 + $0x1a] sm:$0xff]
        %v897 = vld [vmem:[%s440 + $0x22] sm:$0xff]
        %v898 = vld [vmem:[%s440 + $0x32] sm:$0xff]
        %v899 = vld [vmem:[%s440 + $0x3a] sm:$0xff]
        %v900 = vld [vmem:[%s440 + $0x4a] sm:$0xff]
        %v901 = vld [vmem:[%s440 + $0x52] sm:$0xff]
        %v902 = vld [vmem:[%s440 + $0x62] sm:$0xff]
        %v903 = vld [vmem:[%s440 + $0x6a] sm:$0xff]
        %v904 = vld [vmem:[%s440 + $0x7a] sm:$0xff]
        %v905 = vld [vmem:[%s440 + $0x82] sm:$0xff]
        %v906 = vld [vmem:[%s440 + $0x92] sm:$0xff]
        %v907 = vld [vmem:[%s440 + $0x9a] sm:$0xff]
        %v908 = vld [vmem:[%s440 + $0xaa] sm:$0xff]
        %v909 = vld [vmem:[%s440 + $0xb2] sm:$0xff]
        %926 = vrot.lane.b32.xlu0 %v894, 20
        %v927 = vpop.permute.xlu0 %926
        %928 = vrot.lane.b32.xlu0 %v895, 20
        %v929 = vpop.permute.xlu0 %928
        %930 = vrot.lane.b32.xlu0 %v896, 20
        %v931 = vpop.permute.xlu0 %930
        %932 = vrot.lane.b32.xlu0 %v897, 20
        %v933 = vpop.permute.xlu0 %932
        %934 = vrot.lane.b32.xlu0 %v898, 20
        %v935 = vpop.permute.xlu0 %934
        %936 = vrot.lane.b32.xlu0 %v899, 20
        %v937 = vpop.permute.xlu0 %936
        %938 = vrot.lane.b32.xlu0 %v900, 20
        %v939 = vpop.permute.xlu0 %938
        %940 = vrot.lane.b32.xlu0 %v901, 20
        %v941 = vpop.permute.xlu0 %940
        %942 = vrot.lane.b32.xlu0 %v902, 20
        %v943 = vpop.permute.xlu0 %942
        %944 = vrot.lane.b32.xlu0 %v903, 20
        %v945 = vpop.permute.xlu0 %944
        %946 = vrot.lane.b32.xlu0 %v904, 20
        %v947 = vpop.permute.xlu0 %946
        %948 = vrot.lane.b32.xlu0 %v905, 20
        %v949 = vpop.permute.xlu0 %948
        %950 = vrot.lane.b32.xlu0 %v906, 20
        %v951 = vpop.permute.xlu0 %950
        %952 = vrot.lane.b32.xlu0 %v907, 20
        %v953 = vpop.permute.xlu0 %952
        %954 = vrot.lane.b32.xlu0 %v908, 20
        %v955 = vpop.permute.xlu0 %954
        %956 = vrot.lane.b32.xlu0 %v909, 20
        %v957 = vpop.permute.xlu0 %956
        %vm974 = vcmask 195744
        %975 = vst.msk [vmem:[#allocation3] sm:$0xff] %vm974, %v927
        %976 = vst.msk [vmem:[#allocation3 + $0x8] sm:$0xff] %vm974, %v929
        %977 = vst.msk [vmem:[#allocation3 + $0x10] sm:$0xff] %vm974, %v931
        %978 = vst.msk [vmem:[#allocation3 + $0x18] sm:$0xff] %vm974, %v933
        %979 = vst.msk [vmem:[#allocation3 + $0x20] sm:$0xff] %vm974, %v935
        %980 = vst.msk [vmem:[#allocation3 + $0x28] sm:$0xff] %vm974, %v937
        %981 = vst.msk [vmem:[#allocation3 + $0x30] sm:$0xff] %vm974, %v939
        %982 = vst.msk [vmem:[#allocation3 + $0x38] sm:$0xff] %vm974, %v941
        %983 = vst.msk [vmem:[#allocation3 + $0x40] sm:$0xff] %vm974, %v943
        %984 = vst.msk [vmem:[#allocation3 + $0x48] sm:$0xff] %vm974, %v945
        %985 = vst.msk [vmem:[#allocation3 + $0x50] sm:$0xff] %vm974, %v947
        %986 = vst.msk [vmem:[#allocation3 + $0x58] sm:$0xff] %vm974, %v949
        %987 = vst.msk [vmem:[#allocation3 + $0x60] sm:$0xff] %vm974, %v951
        %988 = vst.msk [vmem:[#allocation3 + $0x68] sm:$0xff] %vm974, %v953
        %989 = vst.msk [vmem:[#allocation3 + $0x70] sm:$0xff] %vm974, %v955
        %990 = vst.msk [vmem:[#allocation3 + $0x78] sm:$0xff] %vm974, %v957
        %s991 = scalar_lea.vmem [#allocation2], 48
        %v992 = vld [vmem:[%s991] sm:$0xff]
        %v993 = vld [vmem:[%s991 + $0x8] sm:$0xff]
        %v994 = vld [vmem:[%s991 + $0x18] sm:$0xff]
        %v995 = vld [vmem:[%s991 + $0x20] sm:$0xff]
        %v996 = vld [vmem:[%s991 + $0x30] sm:$0xff]
        %v997 = vld [vmem:[%s991 + $0x38] sm:$0xff]
        %v998 = vld [vmem:[%s991 + $0x48] sm:$0xff]
        %v999 = vld [vmem:[%s991 + $0x50] sm:$0xff]
        %v1000 = vld [vmem:[%s991 + $0x60] sm:$0xff]
        %v1001 = vld [vmem:[%s991 + $0x68] sm:$0xff]
        %v1002 = vld [vmem:[%s991 + $0x78] sm:$0xff]
        %v1003 = vld [vmem:[%s991 + $0x80] sm:$0xff]
        %v1004 = vld [vmem:[%s991 + $0x90] sm:$0xff]
        %v1005 = vld [vmem:[%s991 + $0x98] sm:$0xff]
        %v1006 = vld [vmem:[%s991 + $0xa8] sm:$0xff]
        %v1007 = vld [vmem:[%s991 + $0xb0] sm:$0xff]
        %1024 = vrot.lane.b32.xlu0 %v992, 24
        %v1025 = vpop.permute.xlu0 %1024
        %1026 = vrot.lane.b32.xlu0 %v993, 24
        %v1027 = vpop.permute.xlu0 %1026
        %1028 = vrot.lane.b32.xlu0 %v994, 24
        %v1029 = vpop.permute.xlu0 %1028
        %1030 = vrot.lane.b32.xlu0 %v995, 24
        %v1031 = vpop.permute.xlu0 %1030
        %1032 = vrot.lane.b32.xlu0 %v996, 24
        %v1033 = vpop.permute.xlu0 %1032
        %1034 = vrot.lane.b32.xlu0 %v997, 24
        %v1035 = vpop.permute.xlu0 %1034
        %1036 = vrot.lane.b32.xlu0 %v998, 24
        %v1037 = vpop.permute.xlu0 %1036
        %1038 = vrot.lane.b32.xlu0 %v999, 24
        %v1039 = vpop.permute.xlu0 %1038
        %1040 = vrot.lane.b32.xlu0 %v1000, 24
        %v1041 = vpop.permute.xlu0 %1040
        %1042 = vrot.lane.b32.xlu0 %v1001, 24
        %v1043 = vpop.permute.xlu0 %1042
        %1044 = vrot.lane.b32.xlu0 %v1002, 24
        %v1045 = vpop.permute.xlu0 %1044
        %1046 = vrot.lane.b32.xlu0 %v1003, 24
        %v1047 = vpop.permute.xlu0 %1046
        %1048 = vrot.lane.b32.xlu0 %v1004, 24
        %v1049 = vpop.permute.xlu0 %1048
        %1050 = vrot.lane.b32.xlu0 %v1005, 24
        %v1051 = vpop.permute.xlu0 %1050
        %1052 = vrot.lane.b32.xlu0 %v1006, 24
        %v1053 = vpop.permute.xlu0 %1052
        %1054 = vrot.lane.b32.xlu0 %v1007, 24
        %v1055 = vpop.permute.xlu0 %1054
        %vm1072 = vcmask 228544
        %1073 = vst.msk [vmem:[#allocation3] sm:$0xff] %vm1072, %v1025
        %1074 = vst.msk [vmem:[#allocation3 + $0x8] sm:$0xff] %vm1072, %v1027
        %1075 = vst.msk [vmem:[#allocation3 + $0x10] sm:$0xff] %vm1072, %v1029
        %1076 = vst.msk [vmem:[#allocation3 + $0x18] sm:$0xff] %vm1072, %v1031
        %1077 = vst.msk [vmem:[#allocation3 + $0x20] sm:$0xff] %vm1072, %v1033
        %1078 = vst.msk [vmem:[#allocation3 + $0x28] sm:$0xff] %vm1072, %v1035
        %1079 = vst.msk [vmem:[#allocation3 + $0x30] sm:$0xff] %vm1072, %v1037
        %1080 = vst.msk [vmem:[#allocation3 + $0x38] sm:$0xff] %vm1072, %v1039
        %1081 = vst.msk [vmem:[#allocation3 + $0x40] sm:$0xff] %vm1072, %v1041
        %1082 = vst.msk [vmem:[#allocation3 + $0x48] sm:$0xff] %vm1072, %v1043
        %1083 = vst.msk [vmem:[#allocation3 + $0x50] sm:$0xff] %vm1072, %v1045
        %1084 = vst.msk [vmem:[#allocation3 + $0x58] sm:$0xff] %vm1072, %v1047
        %1085 = vst.msk [vmem:[#allocation3 + $0x60] sm:$0xff] %vm1072, %v1049
        %1086 = vst.msk [vmem:[#allocation3 + $0x68] sm:$0xff] %vm1072, %v1051
        %1087 = vst.msk [vmem:[#allocation3 + $0x70] sm:$0xff] %vm1072, %v1053
        %1088 = vst.msk [vmem:[#allocation3 + $0x78] sm:$0xff] %vm1072, %v1055
        %v1089 = vld [vmem:[%s991 + $0x1] sm:$0xff]
        %v1090 = vld [vmem:[%s991 + $0x9] sm:$0xff]
        %v1091 = vld [vmem:[%s991 + $0x19] sm:$0xff]
        %v1092 = vld [vmem:[%s991 + $0x21] sm:$0xff]
        %v1093 = vld [vmem:[%s991 + $0x31] sm:$0xff]
        %v1094 = vld [vmem:[%s991 + $0x39] sm:$0xff]
        %v1095 = vld [vmem:[%s991 + $0x49] sm:$0xff]
        %v1096 = vld [vmem:[%s991 + $0x51] sm:$0xff]
        %v1097 = vld [vmem:[%s991 + $0x61] sm:$0xff]
        %v1098 = vld [vmem:[%s991 + $0x69] sm:$0xff]
        %v1099 = vld [vmem:[%s991 + $0x79] sm:$0xff]
        %v1100 = vld [vmem:[%s991 + $0x81] sm:$0xff]
        %v1101 = vld [vmem:[%s991 + $0x91] sm:$0xff]
        %v1102 = vld [vmem:[%s991 + $0x99] sm:$0xff]
        %v1103 = vld [vmem:[%s991 + $0xa9] sm:$0xff]
        %v1104 = vld [vmem:[%s991 + $0xb1] sm:$0xff]
        %1121 = vrot.lane.b32.xlu0 %v1089, 28
        %v1122 = vpop.permute.xlu0 %1121
        %1123 = vrot.lane.b32.xlu0 %v1090, 28
        %v1124 = vpop.permute.xlu0 %1123
        %1125 = vrot.lane.b32.xlu0 %v1091, 28
        %v1126 = vpop.permute.xlu0 %1125
        %1127 = vrot.lane.b32.xlu0 %v1092, 28
        %v1128 = vpop.permute.xlu0 %1127
        %1129 = vrot.lane.b32.xlu0 %v1093, 28
        %v1130 = vpop.permute.xlu0 %1129
        %1131 = vrot.lane.b32.xlu0 %v1094, 28
        %v1132 = vpop.permute.xlu0 %1131
        %1133 = vrot.lane.b32.xlu0 %v1095, 28
        %v1134 = vpop.permute.xlu0 %1133
        %1135 = vrot.lane.b32.xlu0 %v1096, 28
        %v1136 = vpop.permute.xlu0 %1135
        %1137 = vrot.lane.b32.xlu0 %v1097, 28
        %v1138 = vpop.permute.xlu0 %1137
        %1139 = vrot.lane.b32.xlu0 %v1098, 28
        %v1140 = vpop.permute.xlu0 %1139
        %1141 = vrot.lane.b32.xlu0 %v1099, 28
        %v1142 = vpop.permute.xlu0 %1141
        %1143 = vrot.lane.b32.xlu0 %v1100, 28
        %v1144 = vpop.permute.xlu0 %1143
        %1145 = vrot.lane.b32.xlu0 %v1101, 28
        %v1146 = vpop.permute.xlu0 %1145
        %1147 = vrot.lane.b32.xlu0 %v1102, 28
        %v1148 = vpop.permute.xlu0 %1147
        %1149 = vrot.lane.b32.xlu0 %v1103, 28
        %v1150 = vpop.permute.xlu0 %1149
        %1151 = vrot.lane.b32.xlu0 %v1104, 28
        %v1152 = vpop.permute.xlu0 %1151
        %vm1169 = vcmask 261344
        %1170 = vst.msk [vmem:[#allocation3] sm:$0xff] %vm1169, %v1122
        %1171 = vst.msk [vmem:[#allocation3 + $0x8] sm:$0xff] %vm1169, %v1124
        %1172 = vst.msk [vmem:[#allocation3 + $0x10] sm:$0xff] %vm1169, %v1126
        %1173 = vst.msk [vmem:[#allocation3 + $0x18] sm:$0xff] %vm1169, %v1128
        %1174 = vst.msk [vmem:[#allocation3 + $0x20] sm:$0xff] %vm1169, %v1130
        %1175 = vst.msk [vmem:[#allocation3 + $0x28] sm:$0xff] %vm1169, %v1132
        %1176 = vst.msk [vmem:[#allocation3 + $0x30] sm:$0xff] %vm1169, %v1134
        %1177 = vst.msk [vmem:[#allocation3 + $0x38] sm:$0xff] %vm1169, %v1136
        %1178 = vst.msk [vmem:[#allocation3 + $0x40] sm:$0xff] %vm1169, %v1138
        %1179 = vst.msk [vmem:[#allocation3 + $0x48] sm:$0xff] %vm1169, %v1140
        %1180 = vst.msk [vmem:[#allocation3 + $0x50] sm:$0xff] %vm1169, %v1142
        %1181 = vst.msk [vmem:[#allocation3 + $0x58] sm:$0xff] %vm1169, %v1144
        %1182 = vst.msk [vmem:[#allocation3 + $0x60] sm:$0xff] %vm1169, %v1146
        %1183 = vst.msk [vmem:[#allocation3 + $0x68] sm:$0xff] %vm1169, %v1148
        %1184 = vst.msk [vmem:[#allocation3 + $0x70] sm:$0xff] %vm1169, %v1150
        %1185 = vst.msk [vmem:[#allocation3 + $0x78] sm:$0xff] %vm1169, %v1152
        %v1186 = vld [vmem:[%s991 + $0x2] sm:$0xff]
        %v1187 = vld [vmem:[%s991 + $0xa] sm:$0xff]
        %v1188 = vld [vmem:[%s991 + $0x1a] sm:$0xff]
        %v1189 = vld [vmem:[%s991 + $0x22] sm:$0xff]
        %v1190 = vld [vmem:[%s991 + $0x32] sm:$0xff]
        %v1191 = vld [vmem:[%s991 + $0x3a] sm:$0xff]
        %v1192 = vld [vmem:[%s991 + $0x4a] sm:$0xff]
        %v1193 = vld [vmem:[%s991 + $0x52] sm:$0xff]
        %v1194 = vld [vmem:[%s991 + $0x62] sm:$0xff]
        %v1195 = vld [vmem:[%s991 + $0x6a] sm:$0xff]
        %v1196 = vld [vmem:[%s991 + $0x7a] sm:$0xff]
        %v1197 = vld [vmem:[%s991 + $0x82] sm:$0xff]
        %v1198 = vld [vmem:[%s991 + $0x92] sm:$0xff]
        %v1199 = vld [vmem:[%s991 + $0x9a] sm:$0xff]
        %v1200 = vld [vmem:[%s991 + $0xaa] sm:$0xff]
        %v1201 = vld [vmem:[%s991 + $0xb2] sm:$0xff]
        %1218 = vrot.lane.b32.xlu0 %v1186, 32
        %v1219 = vpop.permute.xlu0 %1218
        %1220 = vrot.lane.b32.xlu0 %v1187, 32
        %v1221 = vpop.permute.xlu0 %1220
        %1222 = vrot.lane.b32.xlu0 %v1188, 32
        %v1223 = vpop.permute.xlu0 %1222
        %1224 = vrot.lane.b32.xlu0 %v1189, 32
        %v1225 = vpop.permute.xlu0 %1224
        %1226 = vrot.lane.b32.xlu0 %v1190, 32
        %v1227 = vpop.permute.xlu0 %1226
        %1228 = vrot.lane.b32.xlu0 %v1191, 32
        %v1229 = vpop.permute.xlu0 %1228
        %1230 = vrot.lane.b32.xlu0 %v1192, 32
        %v1231 = vpop.permute.xlu0 %1230
        %1232 = vrot.lane.b32.xlu0 %v1193, 32
        %v1233 = vpop.permute.xlu0 %1232
        %1234 = vrot.lane.b32.xlu0 %v1194, 32
        %v1235 = vpop.permute.xlu0 %1234
        %1236 = vrot.lane.b32.xlu0 %v1195, 32
        %v1237 = vpop.permute.xlu0 %1236
        %1238 = vrot.lane.b32.xlu0 %v1196, 32
        %v1239 = vpop.permute.xlu0 %1238
        %1240 = vrot.lane.b32.xlu0 %v1197, 32
        %v1241 = vpop.permute.xlu0 %1240
        %1242 = vrot.lane.b32.xlu0 %v1198, 32
        %v1243 = vpop.permute.xlu0 %1242
        %1244 = vrot.lane.b32.xlu0 %v1199, 32
        %v1245 = vpop.permute.xlu0 %1244
        %1246 = vrot.lane.b32.xlu0 %v1200, 32
        %v1247 = vpop.permute.xlu0 %1246
        %1248 = vrot.lane.b32.xlu0 %v1201, 32
        %v1249 = vpop.permute.xlu0 %1248
        %vm1266 = vcmask 294144
        %1267 = vst.msk [vmem:[#allocation3] sm:$0xff] %vm1266, %v1219
        %1268 = vst.msk [vmem:[#allocation3 + $0x8] sm:$0xff] %vm1266, %v1221
        %1269 = vst.msk [vmem:[#allocation3 + $0x10] sm:$0xff] %vm1266, %v1223
        %1270 = vst.msk [vmem:[#allocation3 + $0x18] sm:$0xff] %vm1266, %v1225
        %1271 = vst.msk [vmem:[#allocation3 + $0x20] sm:$0xff] %vm1266, %v1227
        %1272 = vst.msk [vmem:[#allocation3 + $0x28] sm:$0xff] %vm1266, %v1229
        %1273 = vst.msk [vmem:[#allocation3 + $0x30] sm:$0xff] %vm1266, %v1231
        %1274 = vst.msk [vmem:[#allocation3 + $0x38] sm:$0xff] %vm1266, %v1233
        %1275 = vst.msk [vmem:[#allocation3 + $0x40] sm:$0xff] %vm1266, %v1235
        %1276 = vst.msk [vmem:[#allocation3 + $0x48] sm:$0xff] %vm1266, %v1237
        %1277 = vst.msk [vmem:[#allocation3 + $0x50] sm:$0xff] %vm1266, %v1239
        %1278 = vst.msk [vmem:[#allocation3 + $0x58] sm:$0xff] %vm1266, %v1241
        %1279 = vst.msk [vmem:[#allocation3 + $0x60] sm:$0xff] %vm1266, %v1243
        %1280 = vst.msk [vmem:[#allocation3 + $0x68] sm:$0xff] %vm1266, %v1245
        %1281 = vst.msk [vmem:[#allocation3 + $0x70] sm:$0xff] %vm1266, %v1247
        %1282 = vst.msk [vmem:[#allocation3 + $0x78] sm:$0xff] %vm1266, %v1249
        %v1283 = vld [vmem:[#allocation3] sm:$0xff]
        %v1284 = vld [vmem:[#allocation3 + $0x8] sm:$0xff]
        %v1285 = vld [vmem:[#allocation3 + $0x10] sm:$0xff]
        %v1286 = vld [vmem:[#allocation3 + $0x18] sm:$0xff]
        %v1287 = vld [vmem:[#allocation3 + $0x20] sm:$0xff]
        %v1288 = vld [vmem:[#allocation3 + $0x28] sm:$0xff]
        %v1289 = vld [vmem:[#allocation3 + $0x30] sm:$0xff]
        %v1290 = vld [vmem:[#allocation3 + $0x38] sm:$0xff]
        %v1291 = vld [vmem:[#allocation3 + $0x40] sm:$0xff]
        %v1292 = vld [vmem:[#allocation3 + $0x48] sm:$0xff]
        %v1293 = vld [vmem:[#allocation3 + $0x50] sm:$0xff]
        %v1294 = vld [vmem:[#allocation3 + $0x58] sm:$0xff]
        %v1295 = vld [vmem:[#allocation3 + $0x60] sm:$0xff]
        %v1296 = vld [vmem:[#allocation3 + $0x68] sm:$0xff]
        %v1297 = vld [vmem:[#allocation3 + $0x70] sm:$0xff]
        %v1298 = vld [vmem:[#allocation3 + $0x78] sm:$0xff]
        %v1299 = vld [vmem:[%s3] sm:$0xff]
        %v1300 = vld [vmem:[%s3 + $0x8] sm:$0xff]
        %v1301 = vld [vmem:[%s3 + $0x10] sm:$0xff]
        %v1302 = vld [vmem:[%s3 + $0x18] sm:$0xff]
        %v1303 = vld [vmem:[%s3 + $0x20] sm:$0xff]
        %v1304 = vld [vmem:[%s3 + $0x28] sm:$0xff]
        %v1305 = vld [vmem:[%s3 + $0x30] sm:$0xff]
        %v1306 = vld [vmem:[%s3 + $0x38] sm:$0xff]
        %v1307 = vld [vmem:[%s3 + $0x40] sm:$0xff]
        %v1308 = vld [vmem:[%s3 + $0x48] sm:$0xff]
        %v1309 = vld [vmem:[%s3 + $0x50] sm:$0xff]
        %v1310 = vld [vmem:[%s3 + $0x58] sm:$0xff]
        %v1311 = vld [vmem:[%s3 + $0x60] sm:$0xff]
        %v1312 = vld [vmem:[%s3 + $0x68] sm:$0xff]
        %v1313 = vld [vmem:[%s3 + $0x70] sm:$0xff]
        %v1314 = vld [vmem:[%s3 + $0x78] sm:$0xff]
        %v1315 = vld [vmem:[%s4] sm:$0x1]
        %v1317 = vperm.slane %v1315, 0
        %1319 = vmatpush.msra.mxu0 %v1314
        %1320 = vmatpush.msra.mxu0 %v1313
        %1321 = vmatpush.msra.mxu0 %v1312
        %1322 = vmatpush.msra.mxu0 %v1311
        %1323 = vmatpush.msra.mxu0 %v1310
        %1324 = vmatpush.msra.mxu0 %v1309
        %1325 = vmatpush.msra.mxu0 %v1308
        %1326 = vmatpush.msra.mxu0 %v1307
        %1327 = vmatpush.msra.mxu0 %v1306
        %1328 = vmatpush.msra.mxu0 %v1305
        %1329 = vmatpush.msra.mxu0 %v1304
        %1330 = vmatpush.msra.mxu0 %v1303
        %1331 = vmatpush.msra.mxu0 %v1302
        %1332 = vmatpush.msra.mxu0 %v1301
        %1333 = vmatpush.msra.mxu0 %v1300
        %1334 = vmatpush.msra.mxu0 %v1299
        %1335 = vmatmul.f32.gmra.mxu0 %v1283
        %v1336 = vpop.f32.mrf.mxu0
        %v1337 = vadd.f32 %v1317, %v1336
        %1338 = vmatmul.f32.gmra.mxu0 %v1284
        %v1339 = vpop.f32.mrf.mxu0
        %v1340 = vadd.f32 %v1317, %v1339
        %1341 = vmatmul.f32.gmra.mxu0 %v1285
        %v1342 = vpop.f32.mrf.mxu0
        %v1343 = vadd.f32 %v1317, %v1342
        %1344 = vmatmul.f32.gmra.mxu0 %v1286
        %v1345 = vpop.f32.mrf.mxu0
        %v1346 = vadd.f32 %v1317, %v1345
        %1347 = vmatmul.f32.gmra.mxu0 %v1287
        %v1348 = vpop.f32.mrf.mxu0
        %v1349 = vadd.f32 %v1317, %v1348
        %1350 = vmatmul.f32.gmra.mxu0 %v1288
        %v1351 = vpop.f32.mrf.mxu0
        %v1352 = vadd.f32 %v1317, %v1351
        %1353 = vmatmul.f32.gmra.mxu0 %v1289
        %v1354 = vpop.f32.mrf.mxu0
        %v1355 = vadd.f32 %v1317, %v1354
        %1356 = vmatmul.f32.gmra.mxu0 %v1290
        %v1357 = vpop.f32.mrf.mxu0
        %v1358 = vadd.f32 %v1317, %v1357
        %1359 = vmatmul.f32.gmra.mxu0 %v1291
        %v1360 = vpop.f32.mrf.mxu0
        %v1361 = vadd.f32 %v1317, %v1360
        %1362 = vmatmul.f32.gmra.mxu0 %v1292
        %v1363 = vpop.f32.mrf.mxu0
        %v1364 = vadd.f32 %v1317, %v1363
        %1365 = vmatmul.f32.gmra.mxu0 %v1293
        %v1366 = vpop.f32.mrf.mxu0
        %v1367 = vadd.f32 %v1317, %v1366
        %1368 = vmatmul.f32.gmra.mxu0 %v1294
        %v1369 = vpop.f32.mrf.mxu0
        %v1370 = vadd.f32 %v1317, %v1369
        %1371 = vmatmul.f32.gmra.mxu0 %v1295
        %v1372 = vpop.f32.mrf.mxu0
        %v1373 = vadd.f32 %v1317, %v1372
        %1374 = vmatmul.f32.gmra.mxu0 %v1296
        %v1375 = vpop.f32.mrf.mxu0
        %v1376 = vadd.f32 %v1317, %v1375
        %1377 = vmatmul.f32.gmra.mxu0 %v1297
        %v1378 = vpop.f32.mrf.mxu0
        %v1379 = vadd.f32 %v1317, %v1378
        %1380 = vmatmul.f32.gmra.mxu0 %v1298
        %v1381 = vpop.f32.mrf.mxu0
        %v1382 = vadd.f32 %v1317, %v1381
        %1383 = vdwg.mxu0
        %1384 = vst [vmem:[%s334] sm:$0xff] %v1337
        %1385 = vst [vmem:[%s334 + $0x8] sm:$0xff] %v1340
        %1386 = vst [vmem:[%s334 + $0x10] sm:$0xff] %v1343
        %1387 = vst [vmem:[%s334 + $0x18] sm:$0xff] %v1346
        %1388 = vst [vmem:[%s334 + $0x20] sm:$0xff] %v1349
        %1389 = vst [vmem:[%s334 + $0x28] sm:$0xff] %v1352
        %1390 = vst [vmem:[%s334 + $0x30] sm:$0xff] %v1355
        %1391 = vst [vmem:[%s334 + $0x38] sm:$0xff] %v1358
        %1392 = vst [vmem:[%s334 + $0x40] sm:$0xff] %v1361
        %1393 = vst [vmem:[%s334 + $0x48] sm:$0xff] %v1364
        %1394 = vst [vmem:[%s334 + $0x50] sm:$0xff] %v1367
        %1395 = vst [vmem:[%s334 + $0x58] sm:$0xff] %v1370
        %1396 = vst [vmem:[%s334 + $0x60] sm:$0xff] %v1373
        %1397 = vst [vmem:[%s334 + $0x68] sm:$0xff] %v1376
        %1398 = vst [vmem:[%s334 + $0x70] sm:$0xff] %v1379
        %1399 = vst [vmem:[%s334 + $0x78] sm:$0xff] %v1382
        %s1400 = sand.u32 %s183, 1
        %s1401 = scalar_lea.sflag [#allocation5], %s1400
        %s1402 = sand.u32 %s183, 1
        %s1403 = smul.addr %s1402, 128
        %s1404 = scalar_lea.vmem [#allocation4], %s1403
        // Predicated region
        $region41: #{tpu_custom_call.1} parent=39 // pred_check
          %p1405 = pneg %p193
        $region42: #{tpu_custom_call.1} parent=39 // pred_check_branch
          %1407 = sbr.rel (%p1405) target = $region44
        $region43: #{tpu_custom_call.1} parent=39 // pred_region
          %s1408 = smul.u32 16, %s24
          %1410 = vsyncadd %s1401, 0
          %s1411 = smul.addr %s23, 32
          %s1412 = sadd.s32 %s1408, %s1411
          %s1413 = smul.addr %s1412, 8
          %s1414 = scalar_lea.hbm %s5, %s1413
          %s1415 = sshll.u32 %s1404, 4
          %s1416 = int_to_ptr.vmem [resolvable:$true] %s1415
          %s1417 = sshll.u32 %s1414, 4
          %s1418 = int_to_ptr.hbm [resolvable:$true] %s1417
          %1423 = dma.vmem_to_hbm [thread:$0]  %s1416, 2048, %s1418, %s1401, 128, 128, 8
        $region44: #{tpu_custom_call.1} parent=39 // pred_fallthru
          _
      $region40: #{tpu_custom_call.1} parent=5 // pred_fallthru
        _
      %p1424 = scmp.le.s32.totalorder 2, %s14
      // Predicated region
      $region45: #{tpu_custom_call.1} parent=5 // pred_check
        %p1425 = pneg %p1424
      $region46: #{tpu_custom_call.1} parent=5 // pred_check_branch
        %1427 = sbr.rel (%p1425) target = $region48
      $region47: #{tpu_custom_call.1} parent=5 // pred_region
        %s1428 = ssub.s32 %s14, 2
        // Predicated region
        $region49: #{tpu_custom_call.1} parent=47 // pred_check
          %p1429 = pneg %p199
        $region50: #{tpu_custom_call.1} parent=47 // pred_check_branch
          %1431 = sbr.rel (%p1429) target = $region52
        $region51: #{tpu_custom_call.1} parent=47 // pred_region
          %s1432 = sand.u32 %s184, 1
          %s1433 = scalar_lea.sflag [#allocation5], %s1432
          %s1434 = sand.u32 %s184, 1
          %s1435 = smul.addr %s1434, 128
          %s1436 = scalar_lea.vmem [#allocation4], %s1435
          %1438 = dma.done %s1433, 2048
        $region52: #{tpu_custom_call.1} parent=47 // pred_fallthru
          _
      $region48: #{tpu_custom_call.1} parent=5 // pred_fallthru
        _
    $region6: #{tpu_custom_call.1} parent=1 // loop_footer
      %s18 = sadd.s32 1, %s14
    $region7: #{tpu_custom_call.1} parent=1 // loop_footer_branch
      %13 = sbr.rel target = $region3
    $region8: #{tpu_custom_call.1} parent=1 // loop_exit
      _
    %1439 = vsyncpa [#allocation5], 1
    %s1440 = scalar_lea.sflag [#allocation5], 1
    %1441 = vsyncpa %s1440, 1

</llo_original>
